<compile_context>
chip_gen: v7x
topology: tpu7x:2x2x1
jax: 0.10.0
libtpu: 0.0.40
codegen_flags: <defaults>
</compile_context>

<pallas_src>
import jax
import jax.numpy as jnp
from jax.experimental import pallas as pl
from jax.experimental.pallas import tpu as pltpu


# ----------------------------------------------------------------------------
# Fused forward pass: deconv(k=2,s=2) + concat(skip) + conv3x3 + BN + ReLU.
# ----------------------------------------------------------------------------
def decoder_block_forward(params, x_nchw, skip_nchw, eps=1e-5):
    p = params
    N, cin, H, W = x_nchw.shape
    cup = p["up_w"].shape[1]            # deconv output channels
    cskip = skip_nchw.shape[1]
    ccat = cup + cskip
    cout = p["conv_w"].shape[0]
    HW = H * W

    # ---- parameter prep (tiny, runs once per call under jit) ---------------
    # deconv weight (cin, cup, 2, 2) -> (cin, 4*cup), columns ordered (a, b, co)
    w_up = jnp.transpose(p["up_w"], (0, 2, 3, 1)).reshape(cin, 4 * cup)
    # deconv bias replicated per (a, b) phase, co fastest (matches w_up columns)
    b_up = jnp.broadcast_to(p["up_b"], (4, cup)).reshape(1, 4 * cup)
    # conv weight (cout, ccat, 3, 3) -> (9*ccat, cout), rows ordered (kh, kw, c)
    w_cv = jnp.transpose(p["conv_w"], (2, 3, 1, 0)).reshape(9 * ccat, cout)
    # fold conv bias + eval-mode BatchNorm into per-channel scale/shift
    # (deconv bias can NOT be folded in: zero padding at the image border
    #  would otherwise pick it up).
    scale = p["bn_gamma"] / jnp.sqrt(p["bn_var"] + eps)
    shift = p["bn_beta"] + (p["conv_b"] - p["bn_mean"]) * scale

    # ---- activation layout prep (single fused XLA transpose passes) --------
    # x: NCHW -> (N, H*W, cin), bf16 (halves HBM read for the kernel)
    x_flat = jnp.transpose(x_nchw, (0, 2, 3, 1)).reshape(N, HW, cin)
    x_flat = x_flat.astype(jnp.bfloat16)
    # skip: NCHW -> phase planes (N, 4, H, W, cskip), phase = 2*(row%2)+(col%2)
    skip_ph = jnp.transpose(
        skip_nchw.reshape(N, cskip, H, 2, W, 2), (0, 3, 5, 2, 4, 1)
    ).reshape(N, 4, H, W, cskip).astype(jnp.bfloat16)

    def kernel(x_ref, skip_ref, wup_ref, bup_ref, wcv_ref,
               scale_ref, shift_ref, o_ref, plane_ref):
        # plane_ref: (4, H+2, W+2, ccat) zero-padded phase planes of the
        # upsampled-and-concatenated image, resident in VMEM only.
        plane_ref[...] = jnp.zeros_like(plane_ref)

        # -- ConvTranspose2d(k=2, s=2): one per-pixel bf16 MXU matmul ---------
        y = jnp.dot(x_ref[0], wup_ref[...],
                    preferred_element_type=jnp.float32) + bup_ref[...]
        for a in range(2):
            for b in range(2):
                ph = 2 * a + b
                up = y[:, ph * cup:(ph + 1) * cup].reshape(H, W, cup)
                sk = skip_ref[0, ph].astype(jnp.float32)
                # torch.cat([upsampled, skip], dim=1) order on the channel axis
                plane_ref[ph, 1:1 + H, 1:1 + W, :] = jnp.concatenate(
                    [up, sk], axis=-1)

        # -- Conv2d(3x3, pad=1) + BN + ReLU: one (4*HW, 9*ccat) MXU matmul ----
        mats = []
        for a in range(2):          # output row parity
            for b in range(2):      # output col parity
                taps = []
                for dh in (-1, 0, 1):
                    aa = (a + dh) % 2
                    di = (a + dh - aa) // 2       # -1 / 0 / +1 (python ints)
                    for dw in (-1, 0, 1):
                        bb = (b + dw) % 2
                        dj = (b + dw - bb) // 2
                        taps.append(plane_ref[2 * aa + bb,
                                              1 + di:1 + di + H,
                                              1 + dj:1 + dj + W, :])
                # cast per phase block -> smaller f32 live range before concat
                mats.append(jnp.concatenate(taps, axis=-1)
                            .astype(jnp.bfloat16).reshape(HW, 9 * ccat))
        lhs = jnp.concatenate(mats, axis=0)               # (4*HW, 9*ccat) bf16
        acc = jnp.dot(lhs, wcv_ref[...], preferred_element_type=jnp.float32)
        # f32 epilogue on the accumulator: folded BN + ReLU
        o_ref[0] = jnp.maximum(acc * scale_ref[...] + shift_ref[...], 0.0)

    # Advisory cost estimate so XLA schedules around the custom call sensibly.
    flops = N * (2 * HW * cin * 4 * cup + 2 * 4 * HW * 9 * ccat * cout)
    bytes_accessed = (N * HW * cin * 2 + N * 4 * HW * cskip * 2
                      + cin * 4 * cup * 2 + 9 * ccat * cout * 2
                      + (4 * cup + 2 * cout) * 4
                      + N * 4 * HW * cout * 4)
    out = pl.pallas_call(
        kernel,
        out_shape=jax.ShapeDtypeStruct((N, 4 * HW, cout), jnp.float32),
        grid=(N,),
        in_specs=[
            pl.BlockSpec((1, HW, cin), lambda n: (n, 0, 0)),
            pl.BlockSpec((1, 4, H, W, cskip), lambda n: (n, 0, 0, 0, 0)),
            pl.BlockSpec((cin, 4 * cup), lambda n: (0, 0)),
            pl.BlockSpec((1, 4 * cup), lambda n: (0, 0)),
            pl.BlockSpec((9 * ccat, cout), lambda n: (0, 0)),
            pl.BlockSpec((1, cout), lambda n: (0, 0)),
            pl.BlockSpec((1, cout), lambda n: (0, 0)),
        ],
        out_specs=pl.BlockSpec((1, 4 * HW, cout), lambda n: (n, 0, 0)),
        scratch_shapes=[pltpu.VMEM((4, H + 2, W + 2, ccat), jnp.float32)],
        compiler_params=pltpu.CompilerParams(
            dimension_semantics=("parallel",),
            vmem_limit_bytes=32 * 1024 * 1024,  # explicit, fits every TPU gen
        ),
        cost_estimate=pl.CostEstimate(
            flops=int(flops), transcendentals=0,
            bytes_accessed=int(bytes_accessed)),
    )(x_flat, skip_ph, w_up.astype(jnp.bfloat16), b_up.astype(jnp.float32),
      w_cv.astype(jnp.bfloat16), scale.reshape(1, cout).astype(jnp.float32),
      shift.reshape(1, cout).astype(jnp.float32))

    # Kernel output rows are ordered (phase_a, phase_b, i, j); re-interleave to
    # NCHW. This single XLA transpose replaces the NHWC->NCHW pass we need
    # anyway, so it adds no extra HBM round trip.
    out = out.reshape(N, 2, 2, H, W, cout)
    out = jnp.transpose(out, (0, 5, 3, 1, 4, 2))   # (N, cout, H, a, W, b)
    return out.reshape(N, cout, 2 * H, 2 * W)


_decoder_forward = jax.jit(decoder_block_forward)


# ----------------------------------------------------------------------------
# Module wrapper with deterministic parameter initialization.
# ----------------------------------------------------------------------------
class DecoderBlockPallas:
    def __init__(self, in_channels, out_channels, key, upsample=True):
        # TODO(synk): the upsample=False (Identity + conv) variant is not
        # exercised / implemented here.
        assert upsample, "identity (no-upsample) path not implemented"
        c_up_in = in_channels // 2
        c_up_out = in_channels // 4
        c_cat = in_channels // 4 + in_channels // 2
        ks = jax.random.split(key, 8)
        s_up = 1.0 / jnp.sqrt(c_up_in * 4.0)
        s_cv = 1.0 / jnp.sqrt(c_cat * 9.0)
        self.params = dict(
            up_w=jax.random.uniform(ks[0], (c_up_in, c_up_out, 2, 2),
                                    jnp.float32, -s_up, s_up),
            up_b=jax.random.uniform(ks[1], (c_up_out,), jnp.float32,
                                    -s_up, s_up),
            conv_w=jax.random.uniform(ks[2], (out_channels, c_cat, 3, 3),
                                      jnp.float32, -s_cv, s_cv),
            conv_b=jax.random.uniform(ks[3], (out_channels,), jnp.float32,
                                      -s_cv, s_cv),
            bn_gamma=jax.random.uniform(ks[4], (out_channels,), jnp.float32,
                                        0.5, 1.5),
            bn_beta=0.1 * jax.random.normal(ks[5], (out_channels,),
                                            jnp.float32),
            bn_mean=0.1 * jax.random.normal(ks[6], (out_channels,),
                                            jnp.float32),
            bn_var=jax.random.uniform(ks[7], (out_channels,), jnp.float32,
                                      0.5, 1.5),
        )
        # TODO(synk): BatchNorm is implemented in eval mode (running stats
        # folded into scale/shift); train-mode batch statistics not reproduced.

    def __call__(self, x_nchw, skip_nchw):
        # TODO(synk): F.interpolate(bilinear) resize branch not implemented;
        # the 2x-upsampled x must already match skip spatially (as in U-Net use).
        assert skip_nchw is not None
        assert (2 * x_nchw.shape[2], 2 * x_nchw.shape[3]) == skip_nchw.shape[2:]
        return _decoder_forward(self.params, x_nchw, skip_nchw)


# ----------------------------------------------------------------------------
# Pure-JAX NCHW reference (mirrors the PyTorch math) for validation.
# ----------------------------------------------------------------------------
def decoder_block_ref(x_nchw, skip_nchw, p, eps=1e-5):
    hi = jax.lax.Precision.HIGHEST
    N, Ci, H, W = x_nchw.shape
    Co = p["up_w"].shape[1]
    y = jnp.einsum("nihw,iokl->nohwkl", x_nchw, p["up_w"], precision=hi)
    y = jnp.transpose(y, (0, 1, 2, 4, 3, 5)).reshape(N, Co, 2 * H, 2 * W)
    y = y + p["up_b"][None, :, None, None]
    y = jnp.concatenate([y, skip_nchw], axis=1)
    w2, b2 = p["conv_w"], p["conv_b"]
    Cout = w2.shape[0]
    Ho, Wo = y.shape[2], y.shape[3]
    yp = jnp.pad(y, ((0, 0), (0, 0), (1, 1), (1, 1)))
    out = jnp.zeros((N, Cout, Ho, Wo), jnp.float32)
    for kh in range(3):
        for kw in range(3):
            out = out + jnp.einsum("nchw,oc->nohw",
                                   yp[:, :, kh:kh + Ho, kw:kw + Wo],
                                   w2[:, :, kh, kw], precision=hi)
    out = out + b2[None, :, None, None]
    scale = (p["bn_gamma"] / jnp.sqrt(p["bn_var"] + eps))[None, :, None, None]
    out = (out - p["bn_mean"][None, :, None, None]) * scale
    out = out + p["bn_beta"][None, :, None, None]
    return jnp.maximum(out, 0.0)


if __name__ == "__main__":
    key = jax.random.PRNGKey(0)
    k_param, k_x, k_skip = jax.random.split(key, 3)

    in_channels, out_channels = 8, 4
    N, H, W = 2, 8, 8  # x enters with in_channels // 2 channels at (H, W)

    block = DecoderBlockPallas(in_channels, out_channels, k_param)
    x = jax.random.normal(k_x, (N, in_channels // 2, H, W), jnp.float32)
    skip = jax.random.normal(k_skip, (N, in_channels // 2, 2 * H, 2 * W),
                             jnp.float32)

    out = block(x, skip)
    out = jax.block_until_ready(out)

    assert out.shape == (N, out_channels, 2 * H, 2 * W), out.shape
    ref = decoder_block_ref(x, skip, block.params)
    # Tolerance accommodates bf16 MXU inputs (f32 accumulation); genuine
    # layout/ordering bugs would produce O(1) mismatches, not ~1e-2.
    assert jnp.allclose(out, ref, atol=5e-2, rtol=5e-2), (
        float(jnp.max(jnp.abs(out - ref)))
    )
    print("KERNEL_OK")
</pallas_src>

<mosaic_0001>
module attributes {stable_mosaic.version = 11 : i64} {
  func.func @kernel(%arg0: i32, %arg1: memref<1x64x4xbf16, #tpu.memory_space<vmem>>, %arg2: memref<1x4x8x8x4xbf16, #tpu.memory_space<vmem>>, %arg3: memref<4x8xbf16, #tpu.memory_space<vmem>>, %arg4: memref<1x8xf32, #tpu.memory_space<vmem>>, %arg5: memref<54x4xbf16, #tpu.memory_space<vmem>>, %arg6: memref<1x4xf32, #tpu.memory_space<vmem>>, %arg7: memref<1x4xf32, #tpu.memory_space<vmem>>, %arg8: memref<1x256x4xf32, #tpu.memory_space<vmem>>, %arg9: memref<4x10x10x6xf32, #tpu.memory_space<vmem>>) attributes {dimension_semantics = [#tpu.dimension_semantics<parallel>], iteration_bounds = array<i64: 2>, scalar_prefetch = 0 : i64, scratch_operands = 1 : i64, tpu.core_type = #tpu.core_type<tc>, window_params = [{transform_indices = @transform_0, window_bounds = array<i64: 1, 64, 4>}, {transform_indices = @transform_1, window_bounds = array<i64: 1, 4, 8, 8, 4>}, {pipeline_mode = #tpu.pipeline_mode<synchronous>, transform_indices = @transform_2, window_bounds = array<i64: 4, 8>}, {pipeline_mode = #tpu.pipeline_mode<synchronous>, transform_indices = @transform_3, window_bounds = array<i64: 1, 8>}, {pipeline_mode = #tpu.pipeline_mode<synchronous>, transform_indices = @transform_4, window_bounds = array<i64: 54, 4>}, {pipeline_mode = #tpu.pipeline_mode<synchronous>, transform_indices = @transform_5, window_bounds = array<i64: 1, 4>}, {pipeline_mode = #tpu.pipeline_mode<synchronous>, transform_indices = @transform_6, window_bounds = array<i64: 1, 4>}, {transform_indices = @transform_7, window_bounds = array<i64: 1, 256, 4>}]} {
    %cst = arith.constant 0.000000e+00 : f32
    %0 = vector.broadcast %cst : f32 to vector<4x10x10x6xf32>
    %c0 = arith.constant 0 : index
    %c0_0 = arith.constant 0 : index
    %c0_1 = arith.constant 0 : index
    %c0_2 = arith.constant 0 : index
    %1 = vector.load %arg9[%c0, %c0_0, %c0_1, %c0_2] : memref<4x10x10x6xf32, #tpu.memory_space<vmem>>, vector<4x10x10x6xf32>
    tpu.vector_store %arg9[%c0, %c0_0, %c0_1, %c0_2], %0 {strides = array<i32>} : memref<4x10x10x6xf32, #tpu.memory_space<vmem>>, vector<4x10x10x6xf32>,
    %c0_3 = arith.constant 0 : index
    %c0_4 = arith.constant 0 : index
    %c0_5 = arith.constant 0 : index
    %2 = vector.load %arg1[%c0_3, %c0_4, %c0_5] : memref<1x64x4xbf16, #tpu.memory_space<vmem>>, vector<1x64x4xbf16>
    %3 = vector.shape_cast %2 : vector<1x64x4xbf16> to vector<64x4xbf16>
    %c0_6 = arith.constant 0 : index
    %c0_7 = arith.constant 0 : index
    %4 = vector.load %arg3[%c0_6, %c0_7] : memref<4x8xbf16, #tpu.memory_space<vmem>>, vector<4x8xbf16>
    %cst_8 = arith.constant dense<0.000000e+00> : vector<64x8xf32>
    %5 = tpu.matmul %3, %4, %cst_8 {dimension_numbers = #tpu.dot_dimension_numbers<[1], [0], [0], [1], [0, 0, 1, 1], [], []>} : vector<64x4xbf16>, vector<4x8xbf16>, vector<64x8xf32> -> vector<64x8xf32>
    %c0_9 = arith.constant 0 : index
    %c0_10 = arith.constant 0 : index
    %6 = vector.load %arg4[%c0_9, %c0_10] : memref<1x8xf32, #tpu.memory_space<vmem>>, vector<1x8xf32>
    %7 = vector.broadcast %6 : vector<1x8xf32> to vector<64x8xf32>
    %8 = arith.addf %5, %7 : vector<64x8xf32>
    %9 = vector.extract_strided_slice %8 {offsets = [0, 0], sizes = [64, 2], strides = [1, 1]} : vector<64x8xf32> to vector<64x2xf32>
    %10 = vector.shape_cast %9 : vector<64x2xf32> to vector<8x8x2xf32>
    %c0_11 = arith.constant 0 : index
    %c0_12 = arith.constant 0 : index
    %c0_13 = arith.constant 0 : index
    %c0_14 = arith.constant 0 : index
    %c0_15 = arith.constant 0 : index
    %11 = vector.load %arg2[%c0_11, %c0_12, %c0_13, %c0_14, %c0_15] : memref<1x4x8x8x4xbf16, #tpu.memory_space<vmem>>, vector<1x1x8x8x4xbf16>
    %12 = vector.shape_cast %11 : vector<1x1x8x8x4xbf16> to vector<8x8x4xbf16>
    %13 = arith.extf %12 : vector<8x8x4xbf16> to vector<8x8x4xf32>
    %14 = tpu.concatenate %10, %13 in 2 : vector<8x8x2xf32>, vector<8x8x4xf32> -> vector<8x8x6xf32>
    %c0_16 = arith.constant 0 : index
    %c1 = arith.constant 1 : index
    %c1_17 = arith.constant 1 : index
    %c0_18 = arith.constant 0 : index
    %15 = vector.load %arg9[%c0_16, %c1, %c1_17, %c0_18] : memref<4x10x10x6xf32, #tpu.memory_space<vmem>>, vector<1x8x8x6xf32>
    %16 = vector.shape_cast %15 : vector<1x8x8x6xf32> to vector<8x8x6xf32>
    %17 = vector.shape_cast %14 : vector<8x8x6xf32> to vector<1x8x8x6xf32>
    tpu.vector_store %arg9[%c0_16, %c1, %c1_17, %c0_18], %17 {strides = array<i32>} : memref<4x10x10x6xf32, #tpu.memory_space<vmem>>, vector<1x8x8x6xf32>,
    %18 = vector.extract_strided_slice %8 {offsets = [0, 2], sizes = [64, 2], strides = [1, 1]} : vector<64x8xf32> to vector<64x2xf32>
    %19 = vector.shape_cast %18 : vector<64x2xf32> to vector<8x8x2xf32>
    %c0_19 = arith.constant 0 : index
    %c1_20 = arith.constant 1 : index
    %c0_21 = arith.constant 0 : index
    %c0_22 = arith.constant 0 : index
    %c0_23 = arith.constant 0 : index
    %20 = vector.load %arg2[%c0_19, %c1_20, %c0_21, %c0_22, %c0_23] : memref<1x4x8x8x4xbf16, #tpu.memory_space<vmem>>, vector<1x1x8x8x4xbf16>
    %21 = vector.shape_cast %20 : vector<1x1x8x8x4xbf16> to vector<8x8x4xbf16>
    %22 = arith.extf %21 : vector<8x8x4xbf16> to vector<8x8x4xf32>
    %23 = tpu.concatenate %19, %22 in 2 : vector<8x8x2xf32>, vector<8x8x4xf32> -> vector<8x8x6xf32>
    %c1_24 = arith.constant 1 : index
    %c1_25 = arith.constant 1 : index
    %c1_26 = arith.constant 1 : index
    %c0_27 = arith.constant 0 : index
    %24 = vector.load %arg9[%c1_24, %c1_25, %c1_26, %c0_27] : memref<4x10x10x6xf32, #tpu.memory_space<vmem>>, vector<1x8x8x6xf32>
    %25 = vector.shape_cast %24 : vector<1x8x8x6xf32> to vector<8x8x6xf32>
    %26 = vector.shape_cast %23 : vector<8x8x6xf32> to vector<1x8x8x6xf32>
    tpu.vector_store %arg9[%c1_24, %c1_25, %c1_26, %c0_27], %26 {strides = array<i32>} : memref<4x10x10x6xf32, #tpu.memory_space<vmem>>, vector<1x8x8x6xf32>,
    %27 = vector.extract_strided_slice %8 {offsets = [0, 4], sizes = [64, 2], strides = [1, 1]} : vector<64x8xf32> to vector<64x2xf32>
    %28 = vector.shape_cast %27 : vector<64x2xf32> to vector<8x8x2xf32>
    %c0_28 = arith.constant 0 : index
    %c2 = arith.constant 2 : index
    %c0_29 = arith.constant 0 : index
    %c0_30 = arith.constant 0 : index
    %c0_31 = arith.constant 0 : index
    %29 = vector.load %arg2[%c0_28, %c2, %c0_29, %c0_30, %c0_31] : memref<1x4x8x8x4xbf16, #tpu.memory_space<vmem>>, vector<1x1x8x8x4xbf16>
    %30 = vector.shape_cast %29 : vector<1x1x8x8x4xbf16> to vector<8x8x4xbf16>
    %31 = arith.extf %30 : vector<8x8x4xbf16> to vector<8x8x4xf32>
    %32 = tpu.concatenate %28, %31 in 2 : vector<8x8x2xf32>, vector<8x8x4xf32> -> vector<8x8x6xf32>
    %c2_32 = arith.constant 2 : index
    %c1_33 = arith.constant 1 : index
    %c1_34 = arith.constant 1 : index
    %c0_35 = arith.constant 0 : index
    %33 = vector.load %arg9[%c2_32, %c1_33, %c1_34, %c0_35] : memref<4x10x10x6xf32, #tpu.memory_space<vmem>>, vector<1x8x8x6xf32>
    %34 = vector.shape_cast %33 : vector<1x8x8x6xf32> to vector<8x8x6xf32>
    %35 = vector.shape_cast %32 : vector<8x8x6xf32> to vector<1x8x8x6xf32>
    tpu.vector_store %arg9[%c2_32, %c1_33, %c1_34, %c0_35], %35 {strides = array<i32>} : memref<4x10x10x6xf32, #tpu.memory_space<vmem>>, vector<1x8x8x6xf32>,
    %36 = vector.extract_strided_slice %8 {offsets = [0, 6], sizes = [64, 2], strides = [1, 1]} : vector<64x8xf32> to vector<64x2xf32>
    %37 = vector.shape_cast %36 : vector<64x2xf32> to vector<8x8x2xf32>
    %c0_36 = arith.constant 0 : index
    %c3 = arith.constant 3 : index
    %c0_37 = arith.constant 0 : index
    %c0_38 = arith.constant 0 : index
    %c0_39 = arith.constant 0 : index
    %38 = vector.load %arg2[%c0_36, %c3, %c0_37, %c0_38, %c0_39] : memref<1x4x8x8x4xbf16, #tpu.memory_space<vmem>>, vector<1x1x8x8x4xbf16>
    %39 = vector.shape_cast %38 : vector<1x1x8x8x4xbf16> to vector<8x8x4xbf16>
    %40 = arith.extf %39 : vector<8x8x4xbf16> to vector<8x8x4xf32>
    %41 = tpu.concatenate %37, %40 in 2 : vector<8x8x2xf32>, vector<8x8x4xf32> -> vector<8x8x6xf32>
    %c3_40 = arith.constant 3 : index
    %c1_41 = arith.constant 1 : index
    %c1_42 = arith.constant 1 : index
    %c0_43 = arith.constant 0 : index
    %42 = vector.load %arg9[%c3_40, %c1_41, %c1_42, %c0_43] : memref<4x10x10x6xf32, #tpu.memory_space<vmem>>, vector<1x8x8x6xf32>
    %43 = vector.shape_cast %42 : vector<1x8x8x6xf32> to vector<8x8x6xf32>
    %44 = vector.shape_cast %41 : vector<8x8x6xf32> to vector<1x8x8x6xf32>
    tpu.vector_store %arg9[%c3_40, %c1_41, %c1_42, %c0_43], %44 {strides = array<i32>} : memref<4x10x10x6xf32, #tpu.memory_space<vmem>>, vector<1x8x8x6xf32>,
    %c3_44 = arith.constant 3 : index
    %c0_45 = arith.constant 0 : index
    %c0_46 = arith.constant 0 : index
    %c0_47 = arith.constant 0 : index
    %45 = vector.load %arg9[%c3_44, %c0_45, %c0_46, %c0_47] : memref<4x10x10x6xf32, #tpu.memory_space<vmem>>, vector<1x8x8x6xf32>
    %46 = vector.shape_cast %45 : vector<1x8x8x6xf32> to vector<8x8x6xf32>
    %c2_48 = arith.constant 2 : index
    %c0_49 = arith.constant 0 : index
    %c1_50 = arith.constant 1 : index
    %c0_51 = arith.constant 0 : index
    %47 = vector.load %arg9[%c2_48, %c0_49, %c1_50, %c0_51] : memref<4x10x10x6xf32, #tpu.memory_space<vmem>>, vector<1x8x8x6xf32>
    %48 = vector.shape_cast %47 : vector<1x8x8x6xf32> to vector<8x8x6xf32>
    %c3_52 = arith.constant 3 : index
    %c0_53 = arith.constant 0 : index
    %c1_54 = arith.constant 1 : index
    %c0_55 = arith.constant 0 : index
    %49 = vector.load %arg9[%c3_52, %c0_53, %c1_54, %c0_55] : memref<4x10x10x6xf32, #tpu.memory_space<vmem>>, vector<1x8x8x6xf32>
    %50 = vector.shape_cast %49 : vector<1x8x8x6xf32> to vector<8x8x6xf32>
    %c1_56 = arith.constant 1 : index
    %c1_57 = arith.constant 1 : index
    %c0_58 = arith.constant 0 : index
    %c0_59 = arith.constant 0 : index
    %51 = vector.load %arg9[%c1_56, %c1_57, %c0_58, %c0_59] : memref<4x10x10x6xf32, #tpu.memory_space<vmem>>, vector<1x8x8x6xf32>
    %52 = vector.shape_cast %51 : vector<1x8x8x6xf32> to vector<8x8x6xf32>
    %c0_60 = arith.constant 0 : index
    %c1_61 = arith.constant 1 : index
    %c1_62 = arith.constant 1 : index
    %c0_63 = arith.constant 0 : index
    %53 = vector.load %arg9[%c0_60, %c1_61, %c1_62, %c0_63] : memref<4x10x10x6xf32, #tpu.memory_space<vmem>>, vector<1x8x8x6xf32>
    %54 = vector.shape_cast %53 : vector<1x8x8x6xf32> to vector<8x8x6xf32>
    %c1_64 = arith.constant 1 : index
    %c1_65 = arith.constant 1 : index
    %c1_66 = arith.constant 1 : index
    %c0_67 = arith.constant 0 : index
    %55 = vector.load %arg9[%c1_64, %c1_65, %c1_66, %c0_67] : memref<4x10x10x6xf32, #tpu.memory_space<vmem>>, vector<1x8x8x6xf32>
    %56 = vector.shape_cast %55 : vector<1x8x8x6xf32> to vector<8x8x6xf32>
    %c3_68 = arith.constant 3 : index
    %c1_69 = arith.constant 1 : index
    %c0_70 = arith.constant 0 : index
    %c0_71 = arith.constant 0 : index
    %57 = vector.load %arg9[%c3_68, %c1_69, %c0_70, %c0_71] : memref<4x10x10x6xf32, #tpu.memory_space<vmem>>, vector<1x8x8x6xf32>
    %58 = vector.shape_cast %57 : vector<1x8x8x6xf32> to vector<8x8x6xf32>
    %c2_72 = arith.constant 2 : index
    %c1_73 = arith.constant 1 : index
    %c1_74 = arith.constant 1 : index
    %c0_75 = arith.constant 0 : index
    %59 = vector.load %arg9[%c2_72, %c1_73, %c1_74, %c0_75] : memref<4x10x10x6xf32, #tpu.memory_space<vmem>>, vector<1x8x8x6xf32>
    %60 = vector.shape_cast %59 : vector<1x8x8x6xf32> to vector<8x8x6xf32>
    %c3_76 = arith.constant 3 : index
    %c1_77 = arith.constant 1 : index
    %c1_78 = arith.constant 1 : index
    %c0_79 = arith.constant 0 : index
    %61 = vector.load %arg9[%c3_76, %c1_77, %c1_78, %c0_79] : memref<4x10x10x6xf32, #tpu.memory_space<vmem>>, vector<1x8x8x6xf32>
    %62 = vector.shape_cast %61 : vector<1x8x8x6xf32> to vector<8x8x6xf32>
    %63 = tpu.concatenate %46, %48, %50, %52, %54, %56, %58, %60, %62 in 2 : vector<8x8x6xf32>, vector<8x8x6xf32>, vector<8x8x6xf32>, vector<8x8x6xf32>, vector<8x8x6xf32>, vector<8x8x6xf32>, vector<8x8x6xf32>, vector<8x8x6xf32>, vector<8x8x6xf32> -> vector<8x8x54xf32>
    %64 = arith.truncf %63 : vector<8x8x54xf32> to vector<8x8x54xbf16>
    %65 = vector.shape_cast %64 : vector<8x8x54xbf16> to vector<64x54xbf16>
    %c2_80 = arith.constant 2 : index
    %c0_81 = arith.constant 0 : index
    %c1_82 = arith.constant 1 : index
    %c0_83 = arith.constant 0 : index
    %66 = vector.load %arg9[%c2_80, %c0_81, %c1_82, %c0_83] : memref<4x10x10x6xf32, #tpu.memory_space<vmem>>, vector<1x8x8x6xf32>
    %67 = vector.shape_cast %66 : vector<1x8x8x6xf32> to vector<8x8x6xf32>
    %c3_84 = arith.constant 3 : index
    %c0_85 = arith.constant 0 : index
    %c1_86 = arith.constant 1 : index
    %c0_87 = arith.constant 0 : index
    %68 = vector.load %arg9[%c3_84, %c0_85, %c1_86, %c0_87] : memref<4x10x10x6xf32, #tpu.memory_space<vmem>>, vector<1x8x8x6xf32>
    %69 = vector.shape_cast %68 : vector<1x8x8x6xf32> to vector<8x8x6xf32>
    %c2_88 = arith.constant 2 : index
    %c0_89 = arith.constant 0 : index
    %c2_90 = arith.constant 2 : index
    %c0_91 = arith.constant 0 : index
    %70 = vector.load %arg9[%c2_88, %c0_89, %c2_90, %c0_91] : memref<4x10x10x6xf32, #tpu.memory_space<vmem>>, vector<1x8x8x6xf32>
    %71 = vector.shape_cast %70 : vector<1x8x8x6xf32> to vector<8x8x6xf32>
    %c0_92 = arith.constant 0 : index
    %c1_93 = arith.constant 1 : index
    %c1_94 = arith.constant 1 : index
    %c0_95 = arith.constant 0 : index
    %72 = vector.load %arg9[%c0_92, %c1_93, %c1_94, %c0_95] : memref<4x10x10x6xf32, #tpu.memory_space<vmem>>, vector<1x8x8x6xf32>
    %73 = vector.shape_cast %72 : vector<1x8x8x6xf32> to vector<8x8x6xf32>
    %c1_96 = arith.constant 1 : index
    %c1_97 = arith.constant 1 : index
    %c1_98 = arith.constant 1 : index
    %c0_99 = arith.constant 0 : index
    %74 = vector.load %arg9[%c1_96, %c1_97, %c1_98, %c0_99] : memref<4x10x10x6xf32, #tpu.memory_space<vmem>>, vector<1x8x8x6xf32>
    %75 = vector.shape_cast %74 : vector<1x8x8x6xf32> to vector<8x8x6xf32>
    %c0_100 = arith.constant 0 : index
    %c1_101 = arith.constant 1 : index
    %c2_102 = arith.constant 2 : index
    %c0_103 = arith.constant 0 : index
    %76 = vector.load %arg9[%c0_100, %c1_101, %c2_102, %c0_103] : memref<4x10x10x6xf32, #tpu.memory_space<vmem>>, vector<1x8x8x6xf32>
    %77 = vector.shape_cast %76 : vector<1x8x8x6xf32> to vector<8x8x6xf32>
    %c2_104 = arith.constant 2 : index
    %c1_105 = arith.constant 1 : index
    %c1_106 = arith.constant 1 : index
    %c0_107 = arith.constant 0 : index
    %78 = vector.load %arg9[%c2_104, %c1_105, %c1_106, %c0_107] : memref<4x10x10x6xf32, #tpu.memory_space<vmem>>, vector<1x8x8x6xf32>
    %79 = vector.shape_cast %78 : vector<1x8x8x6xf32> to vector<8x8x6xf32>
    %c3_108 = arith.constant 3 : index
    %c1_109 = arith.constant 1 : index
    %c1_110 = arith.constant 1 : index
    %c0_111 = arith.constant 0 : index
    %80 = vector.load %arg9[%c3_108, %c1_109, %c1_110, %c0_111] : memref<4x10x10x6xf32, #tpu.memory_space<vmem>>, vector<1x8x8x6xf32>
    %81 = vector.shape_cast %80 : vector<1x8x8x6xf32> to vector<8x8x6xf32>
    %c2_112 = arith.constant 2 : index
    %c1_113 = arith.constant 1 : index
    %c2_114 = arith.constant 2 : index
    %c0_115 = arith.constant 0 : index
    %82 = vector.load %arg9[%c2_112, %c1_113, %c2_114, %c0_115] : memref<4x10x10x6xf32, #tpu.memory_space<vmem>>, vector<1x8x8x6xf32>
    %83 = vector.shape_cast %82 : vector<1x8x8x6xf32> to vector<8x8x6xf32>
    %84 = tpu.concatenate %67, %69, %71, %73, %75, %77, %79, %81, %83 in 2 : vector<8x8x6xf32>, vector<8x8x6xf32>, vector<8x8x6xf32>, vector<8x8x6xf32>, vector<8x8x6xf32>, vector<8x8x6xf32>, vector<8x8x6xf32>, vector<8x8x6xf32>, vector<8x8x6xf32> -> vector<8x8x54xf32>
    %85 = arith.truncf %84 : vector<8x8x54xf32> to vector<8x8x54xbf16>
    %86 = vector.shape_cast %85 : vector<8x8x54xbf16> to vector<64x54xbf16>
    %c1_116 = arith.constant 1 : index
    %c1_117 = arith.constant 1 : index
    %c0_118 = arith.constant 0 : index
    %c0_119 = arith.constant 0 : index
    %87 = vector.load %arg9[%c1_116, %c1_117, %c0_118, %c0_119] : memref<4x10x10x6xf32, #tpu.memory_space<vmem>>, vector<1x8x8x6xf32>
    %88 = vector.shape_cast %87 : vector<1x8x8x6xf32> to vector<8x8x6xf32>
    %c0_120 = arith.constant 0 : index
    %c1_121 = arith.constant 1 : index
    %c1_122 = arith.constant 1 : index
    %c0_123 = arith.constant 0 : index
    %89 = vector.load %arg9[%c0_120, %c1_121, %c1_122, %c0_123] : memref<4x10x10x6xf32, #tpu.memory_space<vmem>>, vector<1x8x8x6xf32>
    %90 = vector.shape_cast %89 : vector<1x8x8x6xf32> to vector<8x8x6xf32>
    %c1_124 = arith.constant 1 : index
    %c1_125 = arith.constant 1 : index
    %c1_126 = arith.constant 1 : index
    %c0_127 = arith.constant 0 : index
    %91 = vector.load %arg9[%c1_124, %c1_125, %c1_126, %c0_127] : memref<4x10x10x6xf32, #tpu.memory_space<vmem>>, vector<1x8x8x6xf32>
    %92 = vector.shape_cast %91 : vector<1x8x8x6xf32> to vector<8x8x6xf32>
    %c3_128 = arith.constant 3 : index
    %c1_129 = arith.constant 1 : index
    %c0_130 = arith.constant 0 : index
    %c0_131 = arith.constant 0 : index
    %93 = vector.load %arg9[%c3_128, %c1_129, %c0_130, %c0_131] : memref<4x10x10x6xf32, #tpu.memory_space<vmem>>, vector<1x8x8x6xf32>
    %94 = vector.shape_cast %93 : vector<1x8x8x6xf32> to vector<8x8x6xf32>
    %c2_132 = arith.constant 2 : index
    %c1_133 = arith.constant 1 : index
    %c1_134 = arith.constant 1 : index
    %c0_135 = arith.constant 0 : index
    %95 = vector.load %arg9[%c2_132, %c1_133, %c1_134, %c0_135] : memref<4x10x10x6xf32, #tpu.memory_space<vmem>>, vector<1x8x8x6xf32>
    %96 = vector.shape_cast %95 : vector<1x8x8x6xf32> to vector<8x8x6xf32>
    %c3_136 = arith.constant 3 : index
    %c1_137 = arith.constant 1 : index
    %c1_138 = arith.constant 1 : index
    %c0_139 = arith.constant 0 : index
    %97 = vector.load %arg9[%c3_136, %c1_137, %c1_138, %c0_139] : memref<4x10x10x6xf32, #tpu.memory_space<vmem>>, vector<1x8x8x6xf32>
    %98 = vector.shape_cast %97 : vector<1x8x8x6xf32> to vector<8x8x6xf32>
    %c1_140 = arith.constant 1 : index
    %c2_141 = arith.constant 2 : index
    %c0_142 = arith.constant 0 : index
    %c0_143 = arith.constant 0 : index
    %99 = vector.load %arg9[%c1_140, %c2_141, %c0_142, %c0_143] : memref<4x10x10x6xf32, #tpu.memory_space<vmem>>, vector<1x8x8x6xf32>
    %100 = vector.shape_cast %99 : vector<1x8x8x6xf32> to vector<8x8x6xf32>
    %c0_144 = arith.constant 0 : index
    %c2_145 = arith.constant 2 : index
    %c1_146 = arith.constant 1 : index
    %c0_147 = arith.constant 0 : index
    %101 = vector.load %arg9[%c0_144, %c2_145, %c1_146, %c0_147] : memref<4x10x10x6xf32, #tpu.memory_space<vmem>>, vector<1x8x8x6xf32>
    %102 = vector.shape_cast %101 : vector<1x8x8x6xf32> to vector<8x8x6xf32>
    %c1_148 = arith.constant 1 : index
    %c2_149 = arith.constant 2 : index
    %c1_150 = arith.constant 1 : index
    %c0_151 = arith.constant 0 : index
    %103 = vector.load %arg9[%c1_148, %c2_149, %c1_150, %c0_151] : memref<4x10x10x6xf32, #tpu.memory_space<vmem>>, vector<1x8x8x6xf32>
    %104 = vector.shape_cast %103 : vector<1x8x8x6xf32> to vector<8x8x6xf32>
    %105 = tpu.concatenate %88, %90, %92, %94, %96, %98, %100, %102, %104 in 2 : vector<8x8x6xf32>, vector<8x8x6xf32>, vector<8x8x6xf32>, vector<8x8x6xf32>, vector<8x8x6xf32>, vector<8x8x6xf32>, vector<8x8x6xf32>, vector<8x8x6xf32>, vector<8x8x6xf32> -> vector<8x8x54xf32>
    %106 = arith.truncf %105 : vector<8x8x54xf32> to vector<8x8x54xbf16>
    %107 = vector.shape_cast %106 : vector<8x8x54xbf16> to vector<64x54xbf16>
    %c0_152 = arith.constant 0 : index
    %c1_153 = arith.constant 1 : index
    %c1_154 = arith.constant 1 : index
    %c0_155 = arith.constant 0 : index
    %108 = vector.load %arg9[%c0_152, %c1_153, %c1_154, %c0_155] : memref<4x10x10x6xf32, #tpu.memory_space<vmem>>, vector<1x8x8x6xf32>
    %109 = vector.shape_cast %108 : vector<1x8x8x6xf32> to vector<8x8x6xf32>
    %c1_156 = arith.constant 1 : index
    %c1_157 = arith.constant 1 : index
    %c1_158 = arith.constant 1 : index
    %c0_159 = arith.constant 0 : index
    %110 = vector.load %arg9[%c1_156, %c1_157, %c1_158, %c0_159] : memref<4x10x10x6xf32, #tpu.memory_space<vmem>>, vector<1x8x8x6xf32>
    %111 = vector.shape_cast %110 : vector<1x8x8x6xf32> to vector<8x8x6xf32>
    %c0_160 = arith.constant 0 : index
    %c1_161 = arith.constant 1 : index
    %c2_162 = arith.constant 2 : index
    %c0_163 = arith.constant 0 : index
    %112 = vector.load %arg9[%c0_160, %c1_161, %c2_162, %c0_163] : memref<4x10x10x6xf32, #tpu.memory_space<vmem>>, vector<1x8x8x6xf32>
    %113 = vector.shape_cast %112 : vector<1x8x8x6xf32> to vector<8x8x6xf32>
    %c2_164 = arith.constant 2 : index
    %c1_165 = arith.constant 1 : index
    %c1_166 = arith.constant 1 : index
    %c0_167 = arith.constant 0 : index
    %114 = vector.load %arg9[%c2_164, %c1_165, %c1_166, %c0_167] : memref<4x10x10x6xf32, #tpu.memory_space<vmem>>, vector<1x8x8x6xf32>
    %115 = vector.shape_cast %114 : vector<1x8x8x6xf32> to vector<8x8x6xf32>
    %c3_168 = arith.constant 3 : index
    %c1_169 = arith.constant 1 : index
    %c1_170 = arith.constant 1 : index
    %c0_171 = arith.constant 0 : index
    %116 = vector.load %arg9[%c3_168, %c1_169, %c1_170, %c0_171] : memref<4x10x10x6xf32, #tpu.memory_space<vmem>>, vector<1x8x8x6xf32>
    %117 = vector.shape_cast %116 : vector<1x8x8x6xf32> to vector<8x8x6xf32>
    %c2_172 = arith.constant 2 : index
    %c1_173 = arith.constant 1 : index
    %c2_174 = arith.constant 2 : index
    %c0_175 = arith.constant 0 : index
    %118 = vector.load %arg9[%c2_172, %c1_173, %c2_174, %c0_175] : memref<4x10x10x6xf32, #tpu.memory_space<vmem>>, vector<1x8x8x6xf32>
    %119 = vector.shape_cast %118 : vector<1x8x8x6xf32> to vector<8x8x6xf32>
    %c0_176 = arith.constant 0 : index
    %c2_177 = arith.constant 2 : index
    %c1_178 = arith.constant 1 : index
    %c0_179 = arith.constant 0 : index
    %120 = vector.load %arg9[%c0_176, %c2_177, %c1_178, %c0_179] : memref<4x10x10x6xf32, #tpu.memory_space<vmem>>, vector<1x8x8x6xf32>
    %121 = vector.shape_cast %120 : vector<1x8x8x6xf32> to vector<8x8x6xf32>
    %c1_180 = arith.constant 1 : index
    %c2_181 = arith.constant 2 : index
    %c1_182 = arith.constant 1 : index
    %c0_183 = arith.constant 0 : index
    %122 = vector.load %arg9[%c1_180, %c2_181, %c1_182, %c0_183] : memref<4x10x10x6xf32, #tpu.memory_space<vmem>>, vector<1x8x8x6xf32>
    %123 = vector.shape_cast %122 : vector<1x8x8x6xf32> to vector<8x8x6xf32>
    %c0_184 = arith.constant 0 : index
    %c2_185 = arith.constant 2 : index
    %c2_186 = arith.constant 2 : index
    %c0_187 = arith.constant 0 : index
    %124 = vector.load %arg9[%c0_184, %c2_185, %c2_186, %c0_187] : memref<4x10x10x6xf32, #tpu.memory_space<vmem>>, vector<1x8x8x6xf32>
    %125 = vector.shape_cast %124 : vector<1x8x8x6xf32> to vector<8x8x6xf32>
    %126 = tpu.concatenate %109, %111, %113, %115, %117, %119, %121, %123, %125 in 2 : vector<8x8x6xf32>, vector<8x8x6xf32>, vector<8x8x6xf32>, vector<8x8x6xf32>, vector<8x8x6xf32>, vector<8x8x6xf32>, vector<8x8x6xf32>, vector<8x8x6xf32>, vector<8x8x6xf32> -> vector<8x8x54xf32>
    %127 = arith.truncf %126 : vector<8x8x54xf32> to vector<8x8x54xbf16>
    %128 = vector.shape_cast %127 : vector<8x8x54xbf16> to vector<64x54xbf16>
    %129 = tpu.concatenate %65, %86, %107, %128 in 0 : vector<64x54xbf16>, vector<64x54xbf16>, vector<64x54xbf16>, vector<64x54xbf16> -> vector<256x54xbf16>
    %c0_188 = arith.constant 0 : index
    %c0_189 = arith.constant 0 : index
    %130 = vector.load %arg5[%c0_188, %c0_189] : memref<54x4xbf16, #tpu.memory_space<vmem>>, vector<54x4xbf16>
    %cst_190 = arith.constant dense<0.000000e+00> : vector<256x4xf32>
    %131 = tpu.matmul %129, %130, %cst_190 {dimension_numbers = #tpu.dot_dimension_numbers<[1], [0], [0], [1], [0, 0, 1, 1], [], []>} : vector<256x54xbf16>, vector<54x4xbf16>, vector<256x4xf32> -> vector<256x4xf32>
    %c0_191 = arith.constant 0 : index
    %c0_192 = arith.constant 0 : index
    %132 = vector.load %arg6[%c0_191, %c0_192] : memref<1x4xf32, #tpu.memory_space<vmem>>, vector<1x4xf32>
    %133 = vector.broadcast %132 : vector<1x4xf32> to vector<256x4xf32>
    %134 = arith.mulf %131, %133 : vector<256x4xf32>
    %c0_193 = arith.constant 0 : index
    %c0_194 = arith.constant 0 : index
    %135 = vector.load %arg7[%c0_193, %c0_194] : memref<1x4xf32, #tpu.memory_space<vmem>>, vector<1x4xf32>
    %136 = vector.broadcast %135 : vector<1x4xf32> to vector<256x4xf32>
    %137 = arith.addf %134, %136 : vector<256x4xf32>
    %cst_195 = arith.constant 0.000000e+00 : f32
    %138 = vector.broadcast %cst_195 : f32 to vector<256x4xf32>
    %139 = arith.maximumf %137, %138 : vector<256x4xf32>
    %c0_196 = arith.constant 0 : index
    %c0_197 = arith.constant 0 : index
    %c0_198 = arith.constant 0 : index
    %140 = vector.load %arg8[%c0_196, %c0_197, %c0_198] : memref<1x256x4xf32, #tpu.memory_space<vmem>>, vector<1x256x4xf32>
    %141 = vector.shape_cast %140 : vector<1x256x4xf32> to vector<256x4xf32>
    %142 = vector.shape_cast %139 : vector<256x4xf32> to vector<1x256x4xf32>
    tpu.vector_store %arg8[%c0_196, %c0_197, %c0_198], %142 {strides = array<i32>} : memref<1x256x4xf32, #tpu.memory_space<vmem>>, vector<1x256x4xf32>,
    return
  }
  func.func @transform_0(%arg0: i32) -> (i32, i32, i32) {
    %c0_i32 = arith.constant 0 : i32
    %c0_i32_0 = arith.constant 0 : i32
    %c0_i32_1 = arith.constant 0 : i32
    return %arg0, %c0_i32, %c0_i32_0 : i32, i32, i32
  }
  func.func @transform_1(%arg0: i32) -> (i32, i32, i32, i32, i32) {
    %c0_i32 = arith.constant 0 : i32
    %c0_i32_0 = arith.constant 0 : i32
    %c0_i32_1 = arith.constant 0 : i32
    %c0_i32_2 = arith.constant 0 : i32
    %c0_i32_3 = arith.constant 0 : i32
    return %arg0, %c0_i32, %c0_i32_0, %c0_i32_1, %c0_i32_2 : i32, i32, i32, i32, i32
  }
  func.func @transform_2(%arg0: i32) -> (i32, i32) {
    %c0_i32 = arith.constant 0 : i32
    %c0_i32_0 = arith.constant 0 : i32
    %c0_i32_1 = arith.constant 0 : i32
    return %c0_i32, %c0_i32_0 : i32, i32
  }
  func.func @transform_3(%arg0: i32) -> (i32, i32) {
    %c0_i32 = arith.constant 0 : i32
    %c0_i32_0 = arith.constant 0 : i32
    %c0_i32_1 = arith.constant 0 : i32
    return %c0_i32, %c0_i32_0 : i32, i32
  }
  func.func @transform_4(%arg0: i32) -> (i32, i32) {
    %c0_i32 = arith.constant 0 : i32
    %c0_i32_0 = arith.constant 0 : i32
    %c0_i32_1 = arith.constant 0 : i32
    return %c0_i32, %c0_i32_0 : i32, i32
  }
  func.func @transform_5(%arg0: i32) -> (i32, i32) {
    %c0_i32 = arith.constant 0 : i32
    %c0_i32_0 = arith.constant 0 : i32
    %c0_i32_1 = arith.constant 0 : i32
    return %c0_i32, %c0_i32_0 : i32, i32
  }
  func.func @transform_6(%arg0: i32) -> (i32, i32) {
    %c0_i32 = arith.constant 0 : i32
    %c0_i32_0 = arith.constant 0 : i32
    %c0_i32_1 = arith.constant 0 : i32
    return %c0_i32, %c0_i32_0 : i32, i32
  }
  func.func @transform_7(%arg0: i32) -> (i32, i32, i32) {
    %c0_i32 = arith.constant 0 : i32
    %c0_i32_0 = arith.constant 0 : i32
    %c0_i32_1 = arith.constant 0 : i32
    return %arg0, %c0_i32, %c0_i32_0 : i32, i32, i32
  }
}

</mosaic_0001>

<llo_original>
// kernel: decoder_block_forward.1
$region0: #{decoder_block_forward.1}
  #allocation0 [shape = 'u32[]', space=smem, size = 0x4, offset = 0x4, fixed_abs, tag = 'smem constant byte address 0x4 - core index']
  #allocation1 [shape = 'u32[144,128]{1,0:T(1,128)}', space=vmem, size = 0x12000, scoped, tag = 'internal scratch']
  #allocation2 [shape = 'f32[4,10,10,6]{3,2,1,0:T(8,128)}', space=vmem, size = 0x50000, scoped, tag = 'scratch operand']
  %s0 = inlined_call_operand.vmem [shape: bf16[2,64,4], index: 0, kind: input, shape index: {}]
  %s1 = inlined_call_operand.vmem [shape: bf16[2,4,8,8,4], index: 1, kind: input, shape index: {}]
  %s2 = inlined_call_operand.vmem [shape: bf16[4,8], index: 2, kind: input, shape index: {}]
  %s3 = inlined_call_operand.vmem [shape: f32[1,8], index: 3, kind: input, shape index: {}]
  %s4 = inlined_call_operand.vmem [shape: bf16[54,4], index: 4, kind: input, shape index: {}]
  %s5 = inlined_call_operand.vmem [shape: f32[1,4], index: 5, kind: input, shape index: {}]
  %s6 = inlined_call_operand.vmem [shape: f32[1,4], index: 6, kind: input, shape index: {}]
  %s7 = inlined_call_operand.vmem [shape: f32[2,256,4], index: 7, kind: output, shape index: {}]
  %s8 = sld [smem:[#allocation0]]
  $region61: #{decoder_block_forward.1} parent=0
    _
  %s10 = ssub.s32 1, %s8
  %s11 = scalar_select 0, %s10, %s8
  loop: start=0, step=1, limit=4
  $region2: #{decoder_block_forward.1} parent=0 // loop_pre_header
    _
  $region3: #{decoder_block_forward.1} parent=0 // loop_header
    %s13 = sphi 0, %s17
    %p14 = scmp.ge.s32.totalorder %s13, 4
    %s23 = sphi 0, %s25
    %s26 = sphi 0, %s23
    %s27 = sphi 0, %s26
    %s43 = sphi 0, %s27
    %s49 = sphi 0, %s51
    %s52 = sphi 0, %s49
    %s53 = sphi 0, %s52
    %s69 = sphi 0, %s53
    %s73 = sphi 0, %s73
    %s75 = sphi 0, %s73
    %s76 = sphi 0, %s75
    %s90 = sphi 0, %s76
    %s94 = sphi 0, %s94
    %s96 = sphi 0, %s94
    %s97 = sphi 0, %s96
    %s111 = sphi 0, %s97
    %s115 = sphi 0, %s115
    %s117 = sphi 0, %s115
    %s118 = sphi 0, %s117
    %s132 = sphi 0, %s118
    %s136 = sphi 0, %s136
    %s138 = sphi 0, %s136
    %s139 = sphi 0, %s138
    %s153 = sphi 0, %s139
    %s157 = sphi 0, %s157
    %s159 = sphi 0, %s157
    %s160 = sphi 0, %s159
    %s174 = sphi 0, %s160
    %s180 = sphi 0, %s182
    %s183 = sphi 0, %s180
    %s184 = sphi 0, %s183
    %s200 = sphi 0, %s184
  $region4: #{decoder_block_forward.1} parent=0 // loop_header_branch
    %16 = sbr.rel (%p14) target = $region8
  $region5: #{decoder_block_forward.1} parent=0 // loop_body
    %s18 = ssub.s32 %s13, 1
    %s19 = ssub.s32 %s13, 2
    %s20 = sadd.s32 %s13, 1
    %s21 = ssub.s32 %s13, %s20
    %p22 = scmp.eq.s32.totalorder %s21, 0
    %s24 = sadd.s32 %s23, 1
    %s25 = scalar_select %p22, %s23, %s24
    %p28 = pneg %p22
    %p29 = scmp.eq.s32.totalorder %s13, 1
    %p30 = por %p28, %p29
    %p31 = scmp.ne.s32.totalorder %s23, %s26
    %p32 = scmp.eq.s32.totalorder %s13, 0
    %p33 = por %p31, %p32
    %p34 = scmp.ne.s32.totalorder %s23, %s26
    %p35 = scmp.eq.s32.totalorder %s18, 1
    %p36 = por %p34, %p35
    %p37 = scmp.ne.s32.totalorder %s26, %s27
    %p38 = scmp.eq.s32.totalorder %s18, 0
    %p39 = por %p37, %p38
    %p40 = scmp.ne.s32.totalorder %s26, %s27
    %p41 = scmp.eq.s32.totalorder %s19, 1
    %p42 = por %p40, %p41
    %p44 = scmp.ne.s32.totalorder %s27, %s43
    %p45 = scmp.eq.s32.totalorder %s19, 0
    %p46 = por %p44, %p45
    %s47 = ssub.s32 %s13, %s20
    %p48 = scmp.eq.s32.totalorder %s47, 0
    %s50 = sadd.s32 %s49, 1
    %s51 = scalar_select %p48, %s49, %s50
    %p54 = pneg %p48
    %p55 = scmp.eq.s32.totalorder %s13, 1
    %p56 = por %p54, %p55
    %p57 = scmp.ne.s32.totalorder %s49, %s52
    %p58 = scmp.eq.s32.totalorder %s13, 0
    %p59 = por %p57, %p58
    %p60 = scmp.ne.s32.totalorder %s49, %s52
    %p61 = scmp.eq.s32.totalorder %s18, 1
    %p62 = por %p60, %p61
    %p63 = scmp.ne.s32.totalorder %s52, %s53
    %p64 = scmp.eq.s32.totalorder %s18, 0
    %p65 = por %p63, %p64
    %p66 = scmp.ne.s32.totalorder %s52, %s53
    %p67 = scmp.eq.s32.totalorder %s19, 1
    %p68 = por %p66, %p67
    %p70 = scmp.ne.s32.totalorder %s53, %s69
    %p71 = scmp.eq.s32.totalorder %s19, 0
    %p72 = por %p70, %p71
    %s74 = sadd.s32 %s73, 1
    %p77 = scmp.eq.s32.totalorder %s13, 1
    %p78 = scmp.ne.s32.totalorder %s73, %s75
    %p79 = scmp.eq.s32.totalorder %s13, 0
    %p80 = por %p78, %p79
    %p81 = scmp.ne.s32.totalorder %s73, %s75
    %p82 = scmp.eq.s32.totalorder %s18, 1
    %p83 = por %p81, %p82
    %p84 = scmp.ne.s32.totalorder %s75, %s76
    %p85 = scmp.eq.s32.totalorder %s18, 0
    %p86 = por %p84, %p85
    %p87 = scmp.ne.s32.totalorder %s75, %s76
    %p88 = scmp.eq.s32.totalorder %s19, 1
    %p89 = por %p87, %p88
    %p91 = scmp.ne.s32.totalorder %s76, %s90
    %p92 = scmp.eq.s32.totalorder %s19, 0
    %p93 = por %p91, %p92
    %s95 = sadd.s32 %s94, 1
    %p98 = scmp.eq.s32.totalorder %s13, 1
    %p99 = scmp.ne.s32.totalorder %s94, %s96
    %p100 = scmp.eq.s32.totalorder %s13, 0
    %p101 = por %p99, %p100
    %p102 = scmp.ne.s32.totalorder %s94, %s96
    %p103 = scmp.eq.s32.totalorder %s18, 1
    %p104 = por %p102, %p103
    %p105 = scmp.ne.s32.totalorder %s96, %s97
    %p106 = scmp.eq.s32.totalorder %s18, 0
    %p107 = por %p105, %p106
    %p108 = scmp.ne.s32.totalorder %s96, %s97
    %p109 = scmp.eq.s32.totalorder %s19, 1
    %p110 = por %p108, %p109
    %p112 = scmp.ne.s32.totalorder %s97, %s111
    %p113 = scmp.eq.s32.totalorder %s19, 0
    %p114 = por %p112, %p113
    %s116 = sadd.s32 %s115, 1
    %p119 = scmp.eq.s32.totalorder %s13, 1
    %p120 = scmp.ne.s32.totalorder %s115, %s117
    %p121 = scmp.eq.s32.totalorder %s13, 0
    %p122 = por %p120, %p121
    %p123 = scmp.ne.s32.totalorder %s115, %s117
    %p124 = scmp.eq.s32.totalorder %s18, 1
    %p125 = por %p123, %p124
    %p126 = scmp.ne.s32.totalorder %s117, %s118
    %p127 = scmp.eq.s32.totalorder %s18, 0
    %p128 = por %p126, %p127
    %p129 = scmp.ne.s32.totalorder %s117, %s118
    %p130 = scmp.eq.s32.totalorder %s19, 1
    %p131 = por %p129, %p130
    %p133 = scmp.ne.s32.totalorder %s118, %s132
    %p134 = scmp.eq.s32.totalorder %s19, 0
    %p135 = por %p133, %p134
    %s137 = sadd.s32 %s136, 1
    %p140 = scmp.eq.s32.totalorder %s13, 1
    %p141 = scmp.ne.s32.totalorder %s136, %s138
    %p142 = scmp.eq.s32.totalorder %s13, 0
    %p143 = por %p141, %p142
    %p144 = scmp.ne.s32.totalorder %s136, %s138
    %p145 = scmp.eq.s32.totalorder %s18, 1
    %p146 = por %p144, %p145
    %p147 = scmp.ne.s32.totalorder %s138, %s139
    %p148 = scmp.eq.s32.totalorder %s18, 0
    %p149 = por %p147, %p148
    %p150 = scmp.ne.s32.totalorder %s138, %s139
    %p151 = scmp.eq.s32.totalorder %s19, 1
    %p152 = por %p150, %p151
    %p154 = scmp.ne.s32.totalorder %s139, %s153
    %p155 = scmp.eq.s32.totalorder %s19, 0
    %p156 = por %p154, %p155
    %s158 = sadd.s32 %s157, 1
    %p161 = scmp.eq.s32.totalorder %s13, 1
    %p162 = scmp.ne.s32.totalorder %s157, %s159
    %p163 = scmp.eq.s32.totalorder %s13, 0
    %p164 = por %p162, %p163
    %p165 = scmp.ne.s32.totalorder %s157, %s159
    %p166 = scmp.eq.s32.totalorder %s18, 1
    %p167 = por %p165, %p166
    %p168 = scmp.ne.s32.totalorder %s159, %s160
    %p169 = scmp.eq.s32.totalorder %s18, 0
    %p170 = por %p168, %p169
    %p171 = scmp.ne.s32.totalorder %s159, %s160
    %p172 = scmp.eq.s32.totalorder %s19, 1
    %p173 = por %p171, %p172
    %p175 = scmp.ne.s32.totalorder %s160, %s174
    %p176 = scmp.eq.s32.totalorder %s19, 0
    %p177 = por %p175, %p176
    %s178 = ssub.s32 %s13, %s20
    %p179 = scmp.eq.s32.totalorder %s178, 0
    %s181 = sadd.s32 %s180, 1
    %s182 = scalar_select %p179, %s180, %s181
    %p185 = pneg %p179
    %p186 = scmp.eq.s32.totalorder %s13, 1
    %p187 = por %p185, %p186
    %p188 = scmp.ne.s32.totalorder %s180, %s183
    %p189 = scmp.eq.s32.totalorder %s13, 0
    %p190 = por %p188, %p189
    %p191 = scmp.ne.s32.totalorder %s180, %s183
    %p192 = scmp.eq.s32.totalorder %s18, 1
    %p193 = por %p191, %p192
    %p194 = scmp.ne.s32.totalorder %s183, %s184
    %p195 = scmp.eq.s32.totalorder %s18, 0
    %p196 = por %p194, %p195
    %p197 = scmp.ne.s32.totalorder %s183, %s184
    %p198 = scmp.eq.s32.totalorder %s19, 1
    %p199 = por %p197, %p198
    %p201 = scmp.ne.s32.totalorder %s184, %s200
    %p202 = scmp.eq.s32.totalorder %s19, 0
    %p203 = por %p201, %p202
    %p204 = scmp.le.s32.totalorder 1, %s13
    %p205 = scmp.lt.s32.totalorder %s13, 3
    %p206 = pnand %p204, %p205
    %p207 = pneg %p206
    // Predicated region
    $region9: #{decoder_block_forward.1} parent=5 // pred_check
      _
    $region10: #{decoder_block_forward.1} parent=5 // pred_check_branch
      %209 = sbr.rel (%p206) target = $region12
    $region11: #{decoder_block_forward.1} parent=5 // pred_region
      %s210 = ssub.s32 %s13, 1
      // Predicated region
      $region13: #{decoder_block_forward.1} parent=11 // pred_check
        %p211 = pneg %p86
      $region14: #{decoder_block_forward.1} parent=11 // pred_check_branch
        %213 = sbr.rel (%p211) target = $region16
      $region15: #{decoder_block_forward.1} parent=11 // pred_region
        _
      $region16: #{decoder_block_forward.1} parent=11 // pred_fallthru
        _
      // Predicated region
      $region17: #{decoder_block_forward.1} parent=11 // pred_check
        %p214 = pneg %p107
      $region18: #{decoder_block_forward.1} parent=11 // pred_check_branch
        %216 = sbr.rel (%p214) target = $region20
      $region19: #{decoder_block_forward.1} parent=11 // pred_region
        _
      $region20: #{decoder_block_forward.1} parent=11 // pred_fallthru
        _
      // Predicated region
      $region21: #{decoder_block_forward.1} parent=11 // pred_check
        %p217 = pneg %p128
      $region22: #{decoder_block_forward.1} parent=11 // pred_check_branch
        %219 = sbr.rel (%p217) target = $region24
      $region23: #{decoder_block_forward.1} parent=11 // pred_region
        _
      $region24: #{decoder_block_forward.1} parent=11 // pred_fallthru
        _
      // Predicated region
      $region25: #{decoder_block_forward.1} parent=11 // pred_check
        %p220 = pneg %p149
      $region26: #{decoder_block_forward.1} parent=11 // pred_check_branch
        %222 = sbr.rel (%p220) target = $region28
      $region27: #{decoder_block_forward.1} parent=11 // pred_region
        _
      $region28: #{decoder_block_forward.1} parent=11 // pred_fallthru
        _
      // Predicated region
      $region29: #{decoder_block_forward.1} parent=11 // pred_check
        %p223 = pneg %p170
      $region30: #{decoder_block_forward.1} parent=11 // pred_check_branch
        %225 = sbr.rel (%p223) target = $region32
      $region31: #{decoder_block_forward.1} parent=11 // pred_region
        _
      $region32: #{decoder_block_forward.1} parent=11 // pred_fallthru
        _
    $region12: #{decoder_block_forward.1} parent=5 // pred_fallthru
      _
    %p226 = scmp.lt.s32.totalorder %s13, 2
    // Predicated region
    $region33: #{decoder_block_forward.1} parent=5 // pred_check
      %p227 = pneg %p226
    $region34: #{decoder_block_forward.1} parent=5 // pred_check_branch
      %229 = sbr.rel (%p227) target = $region36
    $region35: #{decoder_block_forward.1} parent=5 // pred_region
      // Predicated region
      $region37: #{decoder_block_forward.1} parent=35 // pred_check
        %p230 = pneg %p33
      $region38: #{decoder_block_forward.1} parent=35 // pred_check_branch
        %232 = sbr.rel (%p230) target = $region40
      $region39: #{decoder_block_forward.1} parent=35 // pred_region
        %p233 = scmp.lt.s32.totalorder %s13, 1
        %s234 = scalar_select %p233, %s13, 1
        %s235 = smul.addr %s234, 8
        %s236 = smul.addr %s235, 4
        %s237 = scalar_lea.vmem %s0, %s236
      $region40: #{decoder_block_forward.1} parent=35 // pred_fallthru
        _
      // Predicated region
      $region41: #{decoder_block_forward.1} parent=35 // pred_check
        %p238 = pneg %p59
      $region42: #{decoder_block_forward.1} parent=35 // pred_check_branch
        %240 = sbr.rel (%p238) target = $region44
      $region43: #{decoder_block_forward.1} parent=35 // pred_region
        %p241 = scmp.lt.s32.totalorder %s13, 1
        %s242 = scalar_select %p241, %s13, 1
        %s243 = smul.addr %s242, 32
        %s244 = smul.addr %s243, 4
        %s245 = scalar_lea.vmem %s1, %s244
      $region44: #{decoder_block_forward.1} parent=35 // pred_fallthru
        _
    $region36: #{decoder_block_forward.1} parent=5 // pred_fallthru
      _
    %p246 = scmp.le.s32.totalorder 1, %s13
    %p247 = scmp.lt.s32.totalorder %s13, 3
    %p248 = pnand %p246, %p247
    %p249 = pneg %p248
    // Predicated region
    $region45: #{decoder_block_forward.1} parent=5 // pred_check
      _
    $region46: #{decoder_block_forward.1} parent=5 // pred_check_branch
      %251 = sbr.rel (%p248) target = $region48
    $region47: #{decoder_block_forward.1} parent=5 // pred_region
      %s252 = ssub.s32 %s13, 1
      %p253 = scmp.lt.s32.totalorder %s18, 1
      %s254 = scalar_select %p253, %s18, 1
      %s255 = smul.addr %s254, 8
      %s256 = smul.addr %s255, 4
      %s257 = scalar_lea.vmem %s0, %s256
      %p258 = pneg %p39
      %p259 = pneg %p36
      %p260 = scmp.lt.s32.totalorder %s18, 1
      %s261 = scalar_select %p260, %s18, 1
      %s262 = smul.addr %s261, 32
      %s263 = smul.addr %s262, 4
      %s264 = scalar_lea.vmem %s1, %s263
      %p265 = pneg %p65
      %p266 = pneg %p62
      %p267 = pneg %p86
      %p268 = pneg %p83
      %p269 = pneg %p107
      %p270 = pneg %p104
      %p271 = pneg %p128
      %p272 = pneg %p125
      %p273 = pneg %p149
      %p274 = pneg %p146
      %p275 = pneg %p170
      %p276 = pneg %p167
      %p277 = pneg %p196
      %p278 = pneg %p193
      %p279 = scmp.lt.s32.totalorder %s18, 1
      %s280 = scalar_select %p279, %s18, 1
      %s281 = smul.addr %s280, 32
      %s282 = smul.addr %s281, 8
      %s283 = scalar_lea.vmem %s7, %s282
      %p284 = scmp.lt.s32.totalorder %s18, 1
      %s285 = scalar_select %p284, %s18, 1
      %s286 = smul.addr %s285, 8
      %s287 = smul.addr %s286, 4
      %s288 = scalar_lea.vmem %s0, %s287
      %p289 = scmp.lt.s32.totalorder %s18, 1
      %s290 = scalar_select %p289, %s18, 1
      %s291 = smul.addr %s290, 32
      %s292 = smul.addr %s291, 4
      %s293 = scalar_lea.vmem %s1, %s292
      %p294 = scmp.lt.s32.totalorder %s18, 1
      %s295 = scalar_select %p294, %s18, 1
      %s296 = smul.addr %s295, 32
      %s297 = smul.addr %s296, 8
      %s298 = scalar_lea.vmem %s7, %s297
      %vm300 = vcmask 48128
      %301 = vst.msk [vmem:[#allocation2] sm:$0xff] %vm300, 0.0
      %vm302 = vcmask 41984
      %303 = vst.msk [vmem:[#allocation2 + $0x8] sm:$0x3] %vm302, 0.0
      %304 = vst.msk [vmem:[#allocation2 + $0x10] sm:$0xff] %vm300, 0.0
      %305 = vst.msk [vmem:[#allocation2 + $0x18] sm:$0x3] %vm302, 0.0
      %306 = vst.msk [vmem:[#allocation2 + $0x20] sm:$0xff] %vm300, 0.0
      %307 = vst.msk [vmem:[#allocation2 + $0x28] sm:$0x3] %vm302, 0.0
      %308 = vst.msk [vmem:[#allocation2 + $0x30] sm:$0xff] %vm300, 0.0
      %309 = vst.msk [vmem:[#allocation2 + $0x38] sm:$0x3] %vm302, 0.0
      %310 = vst.msk [vmem:[#allocation2 + $0x40] sm:$0xff] %vm300, 0.0
      %311 = vst.msk [vmem:[#allocation2 + $0x48] sm:$0x3] %vm302, 0.0
      %312 = vst.msk [vmem:[#allocation2 + $0x50] sm:$0xff] %vm300, 0.0
      %313 = vst.msk [vmem:[#allocation2 + $0x58] sm:$0x3] %vm302, 0.0
      %314 = vst.msk [vmem:[#allocation2 + $0x60] sm:$0xff] %vm300, 0.0
      %315 = vst.msk [vmem:[#allocation2 + $0x68] sm:$0x3] %vm302, 0.0
      %316 = vst.msk [vmem:[#allocation2 + $0x70] sm:$0xff] %vm300, 0.0
      %317 = vst.msk [vmem:[#allocation2 + $0x78] sm:$0x3] %vm302, 0.0
      %318 = vst.msk [vmem:[#allocation2 + $0x80] sm:$0xff] %vm300, 0.0
      %319 = vst.msk [vmem:[#allocation2 + $0x88] sm:$0x3] %vm302, 0.0
      %320 = vst.msk [vmem:[#allocation2 + $0x90] sm:$0xff] %vm300, 0.0
      %321 = vst.msk [vmem:[#allocation2 + $0x98] sm:$0x3] %vm302, 0.0
      %322 = vst.msk [vmem:[#allocation2 + $0xa0] sm:$0xff] %vm300, 0.0
      %323 = vst.msk [vmem:[#allocation2 + $0xa8] sm:$0x3] %vm302, 0.0
      %324 = vst.msk [vmem:[#allocation2 + $0xb0] sm:$0xff] %vm300, 0.0
      %325 = vst.msk [vmem:[#allocation2 + $0xb8] sm:$0x3] %vm302, 0.0
      %326 = vst.msk [vmem:[#allocation2 + $0xc0] sm:$0xff] %vm300, 0.0
      %327 = vst.msk [vmem:[#allocation2 + $0xc8] sm:$0x3] %vm302, 0.0
      %328 = vst.msk [vmem:[#allocation2 + $0xd0] sm:$0xff] %vm300, 0.0
      %329 = vst.msk [vmem:[#allocation2 + $0xd8] sm:$0x3] %vm302, 0.0
      %330 = vst.msk [vmem:[#allocation2 + $0xe0] sm:$0xff] %vm300, 0.0
      %331 = vst.msk [vmem:[#allocation2 + $0xe8] sm:$0x3] %vm302, 0.0
      %332 = vst.msk [vmem:[#allocation2 + $0xf0] sm:$0xff] %vm300, 0.0
      %333 = vst.msk [vmem:[#allocation2 + $0xf8] sm:$0x3] %vm302, 0.0
      %334 = vst.msk [vmem:[#allocation2 + $0x100] sm:$0xff] %vm300, 0.0
      %335 = vst.msk [vmem:[#allocation2 + $0x108] sm:$0x3] %vm302, 0.0
      %336 = vst.msk [vmem:[#allocation2 + $0x110] sm:$0xff] %vm300, 0.0
      %337 = vst.msk [vmem:[#allocation2 + $0x118] sm:$0x3] %vm302, 0.0
      %338 = vst.msk [vmem:[#allocation2 + $0x120] sm:$0xff] %vm300, 0.0
      %339 = vst.msk [vmem:[#allocation2 + $0x128] sm:$0x3] %vm302, 0.0
      %340 = vst.msk [vmem:[#allocation2 + $0x130] sm:$0xff] %vm300, 0.0
      %341 = vst.msk [vmem:[#allocation2 + $0x138] sm:$0x3] %vm302, 0.0
      %342 = vst.msk [vmem:[#allocation2 + $0x140] sm:$0xff] %vm300, 0.0
      %343 = vst.msk [vmem:[#allocation2 + $0x148] sm:$0x3] %vm302, 0.0
      %344 = vst.msk [vmem:[#allocation2 + $0x150] sm:$0xff] %vm300, 0.0
      %345 = vst.msk [vmem:[#allocation2 + $0x158] sm:$0x3] %vm302, 0.0
      %346 = vst.msk [vmem:[#allocation2 + $0x160] sm:$0xff] %vm300, 0.0
      %347 = vst.msk [vmem:[#allocation2 + $0x168] sm:$0x3] %vm302, 0.0
      %348 = vst.msk [vmem:[#allocation2 + $0x170] sm:$0xff] %vm300, 0.0
      %349 = vst.msk [vmem:[#allocation2 + $0x178] sm:$0x3] %vm302, 0.0
      %350 = vst.msk [vmem:[#allocation2 + $0x180] sm:$0xff] %vm300, 0.0
      %351 = vst.msk [vmem:[#allocation2 + $0x188] sm:$0x3] %vm302, 0.0
      %352 = vst.msk [vmem:[#allocation2 + $0x190] sm:$0xff] %vm300, 0.0
      %353 = vst.msk [vmem:[#allocation2 + $0x198] sm:$0x3] %vm302, 0.0
      %354 = vst.msk [vmem:[#allocation2 + $0x1a0] sm:$0xff] %vm300, 0.0
      %355 = vst.msk [vmem:[#allocation2 + $0x1a8] sm:$0x3] %vm302, 0.0
      %356 = vst.msk [vmem:[#allocation2 + $0x1b0] sm:$0xff] %vm300, 0.0
      %357 = vst.msk [vmem:[#allocation2 + $0x1b8] sm:$0x3] %vm302, 0.0
      %358 = vst.msk [vmem:[#allocation2 + $0x1c0] sm:$0xff] %vm300, 0.0
      %359 = vst.msk [vmem:[#allocation2 + $0x1c8] sm:$0x3] %vm302, 0.0
      %360 = vst.msk [vmem:[#allocation2 + $0x1d0] sm:$0xff] %vm300, 0.0
      %361 = vst.msk [vmem:[#allocation2 + $0x1d8] sm:$0x3] %vm302, 0.0
      %362 = vst.msk [vmem:[#allocation2 + $0x1e0] sm:$0xff] %vm300, 0.0
      %363 = vst.msk [vmem:[#allocation2 + $0x1e8] sm:$0x3] %vm302, 0.0
      %364 = vst.msk [vmem:[#allocation2 + $0x1f0] sm:$0xff] %vm300, 0.0
      %365 = vst.msk [vmem:[#allocation2 + $0x1f8] sm:$0x3] %vm302, 0.0
      %366 = vst.msk [vmem:[#allocation2 + $0x200] sm:$0xff] %vm300, 0.0
      %367 = vst.msk [vmem:[#allocation2 + $0x208] sm:$0x3] %vm302, 0.0
      %368 = vst.msk [vmem:[#allocation2 + $0x210] sm:$0xff] %vm300, 0.0
      %369 = vst.msk [vmem:[#allocation2 + $0x218] sm:$0x3] %vm302, 0.0
      %370 = vst.msk [vmem:[#allocation2 + $0x220] sm:$0xff] %vm300, 0.0
      %371 = vst.msk [vmem:[#allocation2 + $0x228] sm:$0x3] %vm302, 0.0
      %372 = vst.msk [vmem:[#allocation2 + $0x230] sm:$0xff] %vm300, 0.0
      %373 = vst.msk [vmem:[#allocation2 + $0x238] sm:$0x3] %vm302, 0.0
      %374 = vst.msk [vmem:[#allocation2 + $0x240] sm:$0xff] %vm300, 0.0
      %375 = vst.msk [vmem:[#allocation2 + $0x248] sm:$0x3] %vm302, 0.0
      %376 = vst.msk [vmem:[#allocation2 + $0x250] sm:$0xff] %vm300, 0.0
      %377 = vst.msk [vmem:[#allocation2 + $0x258] sm:$0x3] %vm302, 0.0
      %378 = vst.msk [vmem:[#allocation2 + $0x260] sm:$0xff] %vm300, 0.0
      %379 = vst.msk [vmem:[#allocation2 + $0x268] sm:$0x3] %vm302, 0.0
      %380 = vst.msk [vmem:[#allocation2 + $0x270] sm:$0xff] %vm300, 0.0
      %381 = vst.msk [vmem:[#allocation2 + $0x278] sm:$0x3] %vm302, 0.0
      %v382 = vld [vmem:[%s288] sm:$0xf]
      %v383 = vld [vmem:[%s288 + $0x4] sm:$0xf]
      %v384 = vld [vmem:[%s288 + $0x8] sm:$0xf]
      %v385 = vld [vmem:[%s288 + $0xc] sm:$0xf]
      %v386 = vld [vmem:[%s288 + $0x10] sm:$0xf]
      %v387 = vld [vmem:[%s288 + $0x14] sm:$0xf]
      %v388 = vld [vmem:[%s288 + $0x18] sm:$0xf]
      %v389 = vld [vmem:[%s288 + $0x1c] sm:$0xf]
      %v390 = vld [vmem:[%s2] sm:$0x3]
      %v391 = vld [vmem:[%s3] sm:$0x1]
      %v393 = vlaneseq
      %v394 = vshrl.u32 %v393, 7
      %v395 = vsub.s32 0, %v394
      %v396 = vrot.slane %v391, %v395
      %v406 = vunpack.c.l.b16 %v382
      %v407 = vunpack.c.l.b16 %v383
      %v408 = vunpack.c.l.b16 %v384
      %v409 = vunpack.c.l.b16 %v385
      %v410 = vunpack.c.l.b16 %v386
      %v411 = vunpack.c.l.b16 %v387
      %v412 = vunpack.c.l.b16 %v388
      %v413 = vunpack.c.l.b16 %v389
      %v414 = vpack.c.b16 %v407, %v406
      %v415 = vpack.c.b16 %v409, %v408
      %v416 = vpack.c.b16 %v411, %v410
      %v417 = vpack.c.b16 %v413, %v412
      %vm418 = vcmask 31744
      %v420 = vsel %vm418, %v414, 0
      %v423 = vsel %vm418, %v415, 0
      %v426 = vsel %vm418, %v416, 0
      %v429 = vsel %vm418, %v417, 0
      %vm431 = vcmask 1041408
      %v433 = vsel %vm431, %v390, 0
      %435 = vmatprep.subr.bf16.mxu0 0
      %436 = vmatpush1.bf16.msra.mxu0 %v433
      %437 = vmatprep.subr.bf16.mxu0 0
      %438 = vmatpush1.bf16.msra.mxu0 0
      %439 = vmatprep.subr.bf16.mxu0 0
      %440 = vmatpush1.bf16.msra.mxu0 0
      %441 = vmatprep.subr.bf16.mxu0 0
      %442 = vmatpush1.bf16.msra.mxu0 0
      %443 = vmatprep.subr.bf16.mxu0 0
      %444 = vmatpush1.bf16.msra.mxu0 0
      %445 = vmatprep.subr.bf16.mxu0 0
      %446 = vmatpush1.bf16.msra.mxu0 0
      %447 = vmatprep.subr.bf16.mxu0 0
      %448 = vmatpush1.bf16.msra.mxu0 0
      %449 = vmatprep.subr.bf16.mxu0 0
      %450 = vmatpush1.bf16.msra.mxu0 0
      %451 = vmatprep.subr.bf16.mxu0 0
      %452 = vmatpush1.bf16.msra.mxu0 0
      %453 = vmatprep.subr.bf16.mxu0 0
      %454 = vmatpush1.bf16.msra.mxu0 0
      %455 = vmatprep.subr.bf16.mxu0 0
      %456 = vmatpush1.bf16.msra.mxu0 0
      %457 = vmatprep.subr.bf16.mxu0 0
      %458 = vmatpush1.bf16.msra.mxu0 0
      %459 = vmatprep.subr.bf16.mxu0 0
      %460 = vmatpush1.bf16.msra.mxu0 0
      %461 = vmatprep.subr.bf16.mxu0 0
      %462 = vmatpush1.bf16.msra.mxu0 0
      %463 = vmatprep.subr.bf16.mxu0 0
      %464 = vmatpush1.bf16.msra.mxu0 0
      %465 = vmatprep.subr.bf16.mxu0 0
      %466 = vmatpush1.bf16.msra.mxu0 0
      %467 = vmatprep.mubr.bf16.mxu0 0
      %468 = vmatmul.mubr.bf16.gmra.mrb[0].mxu0 %v420
      %v469 = vpop.f32.mrb[0].mxu0
      %v470 = vadd.f32 %v396, %v469
      %v471 = vpop.f32.mrb[0].mxu0
      %v472 = vpop.f32.mrb[0].mxu0
      %v473 = vadd.f32 %v396, %v472
      %v474 = vpop.f32.mrb[0].mxu0
      %475 = vmatprep.mubr.bf16.mxu0 0
      %476 = vmatmul.mubr.bf16.gmra.mrb[0].mxu0 %v423
      %v477 = vpop.f32.mrb[0].mxu0
      %v478 = vadd.f32 %v396, %v477
      %v479 = vpop.f32.mrb[0].mxu0
      %v480 = vpop.f32.mrb[0].mxu0
      %v481 = vadd.f32 %v396, %v480
      %v482 = vpop.f32.mrb[0].mxu0
      %483 = vmatprep.mubr.bf16.mxu0 0
      %484 = vmatmul.mubr.bf16.gmra.mrb[0].mxu0 %v426
      %v485 = vpop.f32.mrb[0].mxu0
      %v486 = vadd.f32 %v396, %v485
      %v487 = vpop.f32.mrb[0].mxu0
      %v488 = vpop.f32.mrb[0].mxu0
      %v489 = vadd.f32 %v396, %v488
      %v490 = vpop.f32.mrb[0].mxu0
      %491 = vmatprep.mubr.bf16.mxu0 0
      %492 = vmatmul.mubr.bf16.gmra.mrb[0].mxu0 %v429
      %v493 = vpop.f32.mrb[0].mxu0
      %v494 = vadd.f32 %v396, %v493
      %v495 = vpop.f32.mrb[0].mxu0
      %v496 = vpop.f32.mrb[0].mxu0
      %v497 = vadd.f32 %v396, %v496
      %v498 = vpop.f32.mrb[0].mxu0
      %499 = vdwg.mxu0
      %v500 = vld [vmem:[%s293] sm:$0xf]
      %v501 = vld [vmem:[%s293 + $0x4] sm:$0xf]
      %v502 = vld [vmem:[%s293 + $0x8] sm:$0xf]
      %v503 = vld [vmem:[%s293 + $0xc] sm:$0xf]
      %v504 = vld [vmem:[%s293 + $0x10] sm:$0xf]
      %v505 = vld [vmem:[%s293 + $0x14] sm:$0xf]
      %v506 = vld [vmem:[%s293 + $0x18] sm:$0xf]
      %v507 = vld [vmem:[%s293 + $0x1c] sm:$0xf]
      %v508 = vunpack.c.l.bf16 %v500
      %v509 = vunpack.c.l.bf16 %v501
      %v510 = vunpack.c.l.bf16 %v502
      %v511 = vunpack.c.l.bf16 %v503
      %v512 = vunpack.c.l.bf16 %v504
      %v513 = vunpack.c.l.bf16 %v505
      %v514 = vunpack.c.l.bf16 %v506
      %v515 = vunpack.c.l.bf16 %v507
      %524 = vrot.lane.b32.xlu0 %v508, 2
      %v525 = vpop.permute.xlu0 %524
      %526 = vrot.lane.b32.xlu0 %v509, 2
      %v527 = vpop.permute.xlu0 %526
      %528 = vrot.lane.b32.xlu0 %v510, 2
      %v529 = vpop.permute.xlu0 %528
      %530 = vrot.lane.b32.xlu0 %v511, 2
      %v531 = vpop.permute.xlu0 %530
      %532 = vrot.lane.b32.xlu0 %v512, 2
      %v533 = vpop.permute.xlu0 %532
      %534 = vrot.lane.b32.xlu0 %v513, 2
      %v535 = vpop.permute.xlu0 %534
      %536 = vrot.lane.b32.xlu0 %v514, 2
      %v537 = vpop.permute.xlu0 %536
      %538 = vrot.lane.b32.xlu0 %v515, 2
      %v539 = vpop.permute.xlu0 %538
      %vm548 = vcmask 15360
      %v549 = vsel %vm548, %v470, %v525
      %v550 = vsel %vm548, %v473, %v527
      %v551 = vsel %vm548, %v478, %v529
      %v552 = vsel %vm548, %v481, %v531
      %v553 = vsel %vm548, %v486, %v533
      %v554 = vsel %vm548, %v489, %v535
      %v555 = vsel %vm548, %v494, %v537
      %v556 = vsel %vm548, %v497, %v539
      %s557 = scalar_lea.vmem [#allocation2], 16
      %558 = vst.msk [vmem:[%s557 + $0x1] sm:$0xff] %vm300, %v549
      %559 = vst.msk [vmem:[%s557 + $0x11] sm:$0xff] %vm300, %v550
      %560 = vst.msk [vmem:[%s557 + $0x21] sm:$0xff] %vm300, %v551
      %561 = vst.msk [vmem:[%s557 + $0x31] sm:$0xff] %vm300, %v552
      %562 = vst.msk [vmem:[%s557 + $0x41] sm:$0xff] %vm300, %v553
      %563 = vst.msk [vmem:[%s557 + $0x51] sm:$0xff] %vm300, %v554
      %564 = vst.msk [vmem:[%s557 + $0x61] sm:$0xff] %vm300, %v555
      %565 = vst.msk [vmem:[%s557 + $0x71] sm:$0xff] %vm300, %v556
      %s566 = scalar_lea.vmem %s293, 32
      %v567 = vld [vmem:[%s566] sm:$0xf]
      %v568 = vld [vmem:[%s566 + $0x4] sm:$0xf]
      %v569 = vld [vmem:[%s566 + $0x8] sm:$0xf]
      %v570 = vld [vmem:[%s566 + $0xc] sm:$0xf]
      %v571 = vld [vmem:[%s566 + $0x10] sm:$0xf]
      %v572 = vld [vmem:[%s566 + $0x14] sm:$0xf]
      %v573 = vld [vmem:[%s566 + $0x18] sm:$0xf]
      %v574 = vld [vmem:[%s566 + $0x1c] sm:$0xf]
      %v575 = vunpack.c.l.bf16 %v567
      %v576 = vunpack.c.l.bf16 %v568
      %v577 = vunpack.c.l.bf16 %v569
      %v578 = vunpack.c.l.bf16 %v570
      %v579 = vunpack.c.l.bf16 %v571
      %v580 = vunpack.c.l.bf16 %v572
      %v581 = vunpack.c.l.bf16 %v573
      %v582 = vunpack.c.l.bf16 %v574
      %591 = vrot.lane.b32.xlu0 %v470, 126
      %v592 = vpop.permute.xlu0 %591
      %593 = vrot.lane.b32.xlu0 %v473, 126
      %v594 = vpop.permute.xlu0 %593
      %595 = vrot.lane.b32.xlu0 %v478, 126
      %v596 = vpop.permute.xlu0 %595
      %597 = vrot.lane.b32.xlu0 %v481, 126
      %v598 = vpop.permute.xlu0 %597
      %599 = vrot.lane.b32.xlu0 %v486, 126
      %v600 = vpop.permute.xlu0 %599
      %601 = vrot.lane.b32.xlu0 %v489, 126
      %v602 = vpop.permute.xlu0 %601
      %603 = vrot.lane.b32.xlu0 %v494, 126
      %v604 = vpop.permute.xlu0 %603
      %605 = vrot.lane.b32.xlu0 %v497, 126
      %v606 = vpop.permute.xlu0 %605
      %623 = vrot.lane.b32.xlu0 %v575, 2
      %v624 = vpop.permute.xlu0 %623
      %625 = vrot.lane.b32.xlu0 %v576, 2
      %v626 = vpop.permute.xlu0 %625
      %627 = vrot.lane.b32.xlu0 %v577, 2
      %v628 = vpop.permute.xlu0 %627
      %629 = vrot.lane.b32.xlu0 %v578, 2
      %v630 = vpop.permute.xlu0 %629
      %631 = vrot.lane.b32.xlu0 %v579, 2
      %v632 = vpop.permute.xlu0 %631
      %633 = vrot.lane.b32.xlu0 %v580, 2
      %v634 = vpop.permute.xlu0 %633
      %635 = vrot.lane.b32.xlu0 %v581, 2
      %v636 = vpop.permute.xlu0 %635
      %637 = vrot.lane.b32.xlu0 %v582, 2
      %v638 = vpop.permute.xlu0 %637
      %v647 = vsel %vm548, %v592, %v624
      %v648 = vsel %vm548, %v594, %v626
      %v649 = vsel %vm548, %v596, %v628
      %v650 = vsel %vm548, %v598, %v630
      %v651 = vsel %vm548, %v600, %v632
      %v652 = vsel %vm548, %v602, %v634
      %v653 = vsel %vm548, %v604, %v636
      %v654 = vsel %vm548, %v606, %v638
      %s655 = scalar_lea.vmem [#allocation2], 176
      %656 = vst.msk [vmem:[%s655 + $0x1] sm:$0xff] %vm300, %v647
      %657 = vst.msk [vmem:[%s655 + $0x11] sm:$0xff] %vm300, %v648
      %658 = vst.msk [vmem:[%s655 + $0x21] sm:$0xff] %vm300, %v649
      %659 = vst.msk [vmem:[%s655 + $0x31] sm:$0xff] %vm300, %v650
      %660 = vst.msk [vmem:[%s655 + $0x41] sm:$0xff] %vm300, %v651
      %661 = vst.msk [vmem:[%s655 + $0x51] sm:$0xff] %vm300, %v652
      %662 = vst.msk [vmem:[%s655 + $0x61] sm:$0xff] %vm300, %v653
      %663 = vst.msk [vmem:[%s655 + $0x71] sm:$0xff] %vm300, %v654
      %s664 = scalar_lea.vmem %s293, 64
      %v665 = vld [vmem:[%s664] sm:$0xf]
      %v666 = vld [vmem:[%s664 + $0x4] sm:$0xf]
      %v667 = vld [vmem:[%s664 + $0x8] sm:$0xf]
      %v668 = vld [vmem:[%s664 + $0xc] sm:$0xf]
      %v669 = vld [vmem:[%s664 + $0x10] sm:$0xf]
      %v670 = vld [vmem:[%s664 + $0x14] sm:$0xf]
      %v671 = vld [vmem:[%s664 + $0x18] sm:$0xf]
      %v672 = vld [vmem:[%s664 + $0x1c] sm:$0xf]
      %v673 = vunpack.c.l.bf16 %v665
      %v674 = vunpack.c.l.bf16 %v666
      %v675 = vunpack.c.l.bf16 %v667
      %v676 = vunpack.c.l.bf16 %v668
      %v677 = vunpack.c.l.bf16 %v669
      %v678 = vunpack.c.l.bf16 %v670
      %v679 = vunpack.c.l.bf16 %v671
      %v680 = vunpack.c.l.bf16 %v672
      %681 = vrot.lane.b32.xlu0 %v470, 124
      %v682 = vpop.permute.xlu0 %681
      %683 = vrot.lane.b32.xlu0 %v473, 124
      %v684 = vpop.permute.xlu0 %683
      %685 = vrot.lane.b32.xlu0 %v478, 124
      %v686 = vpop.permute.xlu0 %685
      %687 = vrot.lane.b32.xlu0 %v481, 124
      %v688 = vpop.permute.xlu0 %687
      %689 = vrot.lane.b32.xlu0 %v486, 124
      %v690 = vpop.permute.xlu0 %689
      %691 = vrot.lane.b32.xlu0 %v489, 124
      %v692 = vpop.permute.xlu0 %691
      %693 = vrot.lane.b32.xlu0 %v494, 124
      %v694 = vpop.permute.xlu0 %693
      %695 = vrot.lane.b32.xlu0 %v497, 124
      %v696 = vpop.permute.xlu0 %695
      %713 = vrot.lane.b32.xlu0 %v673, 2
      %v714 = vpop.permute.xlu0 %713
      %715 = vrot.lane.b32.xlu0 %v674, 2
      %v716 = vpop.permute.xlu0 %715
      %717 = vrot.lane.b32.xlu0 %v675, 2
      %v718 = vpop.permute.xlu0 %717
      %719 = vrot.lane.b32.xlu0 %v676, 2
      %v720 = vpop.permute.xlu0 %719
      %721 = vrot.lane.b32.xlu0 %v677, 2
      %v722 = vpop.permute.xlu0 %721
      %723 = vrot.lane.b32.xlu0 %v678, 2
      %v724 = vpop.permute.xlu0 %723
      %725 = vrot.lane.b32.xlu0 %v679, 2
      %v726 = vpop.permute.xlu0 %725
      %727 = vrot.lane.b32.xlu0 %v680, 2
      %v728 = vpop.permute.xlu0 %727
      %v737 = vsel %vm548, %v682, %v714
      %v738 = vsel %vm548, %v684, %v716
      %v739 = vsel %vm548, %v686, %v718
      %v740 = vsel %vm548, %v688, %v720
      %v741 = vsel %vm548, %v690, %v722
      %v742 = vsel %vm548, %v692, %v724
      %v743 = vsel %vm548, %v694, %v726
      %v744 = vsel %vm548, %v696, %v728
      %s745 = scalar_lea.vmem [#allocation2], 336
      %746 = vst.msk [vmem:[%s745 + $0x1] sm:$0xff] %vm300, %v737
      %747 = vst.msk [vmem:[%s745 + $0x11] sm:$0xff] %vm300, %v738
      %748 = vst.msk [vmem:[%s745 + $0x21] sm:$0xff] %vm300, %v739
      %749 = vst.msk [vmem:[%s745 + $0x31] sm:$0xff] %vm300, %v740
      %750 = vst.msk [vmem:[%s745 + $0x41] sm:$0xff] %vm300, %v741
      %751 = vst.msk [vmem:[%s745 + $0x51] sm:$0xff] %vm300, %v742
      %752 = vst.msk [vmem:[%s745 + $0x61] sm:$0xff] %vm300, %v743
      %753 = vst.msk [vmem:[%s745 + $0x71] sm:$0xff] %vm300, %v744
      %s754 = scalar_lea.vmem %s293, 96
      %v755 = vld [vmem:[%s754] sm:$0xf]
      %v756 = vld [vmem:[%s754 + $0x4] sm:$0xf]
      %v757 = vld [vmem:[%s754 + $0x8] sm:$0xf]
      %v758 = vld [vmem:[%s754 + $0xc] sm:$0xf]
      %v759 = vld [vmem:[%s754 + $0x10] sm:$0xf]
      %v760 = vld [vmem:[%s754 + $0x14] sm:$0xf]
      %v761 = vld [vmem:[%s754 + $0x18] sm:$0xf]
      %v762 = vld [vmem:[%s754 + $0x1c] sm:$0xf]
      %v763 = vunpack.c.l.bf16 %v755
      %v764 = vunpack.c.l.bf16 %v756
      %v765 = vunpack.c.l.bf16 %v757
      %v766 = vunpack.c.l.bf16 %v758
      %v767 = vunpack.c.l.bf16 %v759
      %v768 = vunpack.c.l.bf16 %v760
      %v769 = vunpack.c.l.bf16 %v761
      %v770 = vunpack.c.l.bf16 %v762
      %771 = vrot.lane.b32.xlu0 %v470, 122
      %v772 = vpop.permute.xlu0 %771
      %773 = vrot.lane.b32.xlu0 %v473, 122
      %v774 = vpop.permute.xlu0 %773
      %775 = vrot.lane.b32.xlu0 %v478, 122
      %v776 = vpop.permute.xlu0 %775
      %777 = vrot.lane.b32.xlu0 %v481, 122
      %v778 = vpop.permute.xlu0 %777
      %779 = vrot.lane.b32.xlu0 %v486, 122
      %v780 = vpop.permute.xlu0 %779
      %781 = vrot.lane.b32.xlu0 %v489, 122
      %v782 = vpop.permute.xlu0 %781
      %783 = vrot.lane.b32.xlu0 %v494, 122
      %v784 = vpop.permute.xlu0 %783
      %785 = vrot.lane.b32.xlu0 %v497, 122
      %v786 = vpop.permute.xlu0 %785
      %803 = vrot.lane.b32.xlu0 %v763, 2
      %v804 = vpop.permute.xlu0 %803
      %805 = vrot.lane.b32.xlu0 %v764, 2
      %v806 = vpop.permute.xlu0 %805
      %807 = vrot.lane.b32.xlu0 %v765, 2
      %v808 = vpop.permute.xlu0 %807
      %809 = vrot.lane.b32.xlu0 %v766, 2
      %v810 = vpop.permute.xlu0 %809
      %811 = vrot.lane.b32.xlu0 %v767, 2
      %v812 = vpop.permute.xlu0 %811
      %813 = vrot.lane.b32.xlu0 %v768, 2
      %v814 = vpop.permute.xlu0 %813
      %815 = vrot.lane.b32.xlu0 %v769, 2
      %v816 = vpop.permute.xlu0 %815
      %817 = vrot.lane.b32.xlu0 %v770, 2
      %v818 = vpop.permute.xlu0 %817
      %v827 = vsel %vm548, %v772, %v804
      %v828 = vsel %vm548, %v774, %v806
      %v829 = vsel %vm548, %v776, %v808
      %v830 = vsel %vm548, %v778, %v810
      %v831 = vsel %vm548, %v780, %v812
      %v832 = vsel %vm548, %v782, %v814
      %v833 = vsel %vm548, %v784, %v816
      %v834 = vsel %vm548, %v786, %v818
      %s835 = scalar_lea.vmem [#allocation2], 496
      %836 = vst.msk [vmem:[%s835 + $0x1] sm:$0xff] %vm300, %v827
      %837 = vst.msk [vmem:[%s835 + $0x11] sm:$0xff] %vm300, %v828
      %838 = vst.msk [vmem:[%s835 + $0x21] sm:$0xff] %vm300, %v829
      %839 = vst.msk [vmem:[%s835 + $0x31] sm:$0xff] %vm300, %v830
      %840 = vst.msk [vmem:[%s835 + $0x41] sm:$0xff] %vm300, %v831
      %841 = vst.msk [vmem:[%s835 + $0x51] sm:$0xff] %vm300, %v832
      %842 = vst.msk [vmem:[%s835 + $0x61] sm:$0xff] %vm300, %v833
      %843 = vst.msk [vmem:[%s835 + $0x71] sm:$0xff] %vm300, %v834
      %s844 = scalar_lea.vmem [#allocation2], 480
      %v845 = vld [vmem:[%s844] sm:$0xff]
      %v846 = vld [vmem:[%s844 + $0x10] sm:$0xff]
      %v847 = vld [vmem:[%s844 + $0x20] sm:$0xff]
      %v848 = vld [vmem:[%s844 + $0x30] sm:$0xff]
      %v849 = vld [vmem:[%s844 + $0x40] sm:$0xff]
      %v850 = vld [vmem:[%s844 + $0x50] sm:$0xff]
      %v851 = vld [vmem:[%s844 + $0x60] sm:$0xff]
      %v852 = vld [vmem:[%s844 + $0x70] sm:$0xff]
      %s853 = scalar_lea.vmem [#allocation2], 320
      %v854 = vld [vmem:[%s853 + $0x1] sm:$0xff]
      %v855 = vld [vmem:[%s853 + $0x11] sm:$0xff]
      %v856 = vld [vmem:[%s853 + $0x21] sm:$0xff]
      %v857 = vld [vmem:[%s853 + $0x31] sm:$0xff]
      %v858 = vld [vmem:[%s853 + $0x41] sm:$0xff]
      %v859 = vld [vmem:[%s853 + $0x51] sm:$0xff]
      %v860 = vld [vmem:[%s853 + $0x61] sm:$0xff]
      %v861 = vld [vmem:[%s853 + $0x71] sm:$0xff]
      %v862 = vld [vmem:[%s844 + $0x1] sm:$0xff]
      %v863 = vld [vmem:[%s844 + $0x11] sm:$0xff]
      %v864 = vld [vmem:[%s844 + $0x21] sm:$0xff]
      %v865 = vld [vmem:[%s844 + $0x31] sm:$0xff]
      %v866 = vld [vmem:[%s844 + $0x41] sm:$0xff]
      %v867 = vld [vmem:[%s844 + $0x51] sm:$0xff]
      %v868 = vld [vmem:[%s844 + $0x61] sm:$0xff]
      %v869 = vld [vmem:[%s844 + $0x71] sm:$0xff]
      %v870 = vld [vmem:[%s655] sm:$0xff]
      %v871 = vld [vmem:[%s655 + $0x10] sm:$0xff]
      %v872 = vld [vmem:[%s655 + $0x20] sm:$0xff]
      %v873 = vld [vmem:[%s655 + $0x30] sm:$0xff]
      %v874 = vld [vmem:[%s655 + $0x40] sm:$0xff]
      %v875 = vld [vmem:[%s655 + $0x50] sm:$0xff]
      %v876 = vld [vmem:[%s655 + $0x60] sm:$0xff]
      %v877 = vld [vmem:[%s655 + $0x70] sm:$0xff]
      %v878 = vld [vmem:[%s557 + $0x1] sm:$0xff]
      %v879 = vld [vmem:[%s557 + $0x11] sm:$0xff]
      %v880 = vld [vmem:[%s557 + $0x21] sm:$0xff]
      %v881 = vld [vmem:[%s557 + $0x31] sm:$0xff]
      %v882 = vld [vmem:[%s557 + $0x41] sm:$0xff]
      %v883 = vld [vmem:[%s557 + $0x51] sm:$0xff]
      %v884 = vld [vmem:[%s557 + $0x61] sm:$0xff]
      %v885 = vld [vmem:[%s557 + $0x71] sm:$0xff]
      %v886 = vld [vmem:[%s655 + $0x1] sm:$0xff]
      %v887 = vld [vmem:[%s655 + $0x11] sm:$0xff]
      %v888 = vld [vmem:[%s655 + $0x21] sm:$0xff]
      %v889 = vld [vmem:[%s655 + $0x31] sm:$0xff]
      %v890 = vld [vmem:[%s655 + $0x41] sm:$0xff]
      %v891 = vld [vmem:[%s655 + $0x51] sm:$0xff]
      %v892 = vld [vmem:[%s655 + $0x61] sm:$0xff]
      %v893 = vld [vmem:[%s655 + $0x71] sm:$0xff]
      %v894 = vld [vmem:[%s835] sm:$0xff]
      %v895 = vld [vmem:[%s835 + $0x10] sm:$0xff]
      %v896 = vld [vmem:[%s835 + $0x20] sm:$0xff]
      %v897 = vld [vmem:[%s835 + $0x30] sm:$0xff]
      %v898 = vld [vmem:[%s835 + $0x40] sm:$0xff]
      %v899 = vld [vmem:[%s835 + $0x50] sm:$0xff]
      %v900 = vld [vmem:[%s835 + $0x60] sm:$0xff]
      %v901 = vld [vmem:[%s835 + $0x70] sm:$0xff]
      %v902 = vld [vmem:[%s745 + $0x1] sm:$0xff]
      %v903 = vld [vmem:[%s745 + $0x11] sm:$0xff]
      %v904 = vld [vmem:[%s745 + $0x21] sm:$0xff]
      %v905 = vld [vmem:[%s745 + $0x31] sm:$0xff]
      %v906 = vld [vmem:[%s745 + $0x41] sm:$0xff]
      %v907 = vld [vmem:[%s745 + $0x51] sm:$0xff]
      %v908 = vld [vmem:[%s745 + $0x61] sm:$0xff]
      %v909 = vld [vmem:[%s745 + $0x71] sm:$0xff]
      %v910 = vld [vmem:[%s835 + $0x1] sm:$0xff]
      %v911 = vld [vmem:[%s835 + $0x11] sm:$0xff]
      %v912 = vld [vmem:[%s835 + $0x21] sm:$0xff]
      %v913 = vld [vmem:[%s835 + $0x31] sm:$0xff]
      %v914 = vld [vmem:[%s835 + $0x41] sm:$0xff]
      %v915 = vld [vmem:[%s835 + $0x51] sm:$0xff]
      %v916 = vld [vmem:[%s835 + $0x61] sm:$0xff]
      %v917 = vld [vmem:[%s835 + $0x71] sm:$0xff]
      %926 = vrot.lane.b32.xlu0 %v854, 6
      %v927 = vpop.permute.xlu0 %926
      %928 = vrot.lane.b32.xlu0 %v855, 6
      %v929 = vpop.permute.xlu0 %928
      %930 = vrot.lane.b32.xlu0 %v856, 6
      %v931 = vpop.permute.xlu0 %930
      %932 = vrot.lane.b32.xlu0 %v857, 6
      %v933 = vpop.permute.xlu0 %932
      %934 = vrot.lane.b32.xlu0 %v858, 6
      %v935 = vpop.permute.xlu0 %934
      %936 = vrot.lane.b32.xlu0 %v859, 6
      %v937 = vpop.permute.xlu0 %936
      %938 = vrot.lane.b32.xlu0 %v860, 6
      %v939 = vpop.permute.xlu0 %938
      %940 = vrot.lane.b32.xlu0 %v861, 6
      %v941 = vpop.permute.xlu0 %940
      %958 = vrot.lane.b32.xlu0 %v862, 12
      %v959 = vpop.permute.xlu0 %958
      %960 = vrot.lane.b32.xlu0 %v863, 12
      %v961 = vpop.permute.xlu0 %960
      %962 = vrot.lane.b32.xlu0 %v864, 12
      %v963 = vpop.permute.xlu0 %962
      %964 = vrot.lane.b32.xlu0 %v865, 12
      %v965 = vpop.permute.xlu0 %964
      %966 = vrot.lane.b32.xlu0 %v866, 12
      %v967 = vpop.permute.xlu0 %966
      %968 = vrot.lane.b32.xlu0 %v867, 12
      %v969 = vpop.permute.xlu0 %968
      %970 = vrot.lane.b32.xlu0 %v868, 12
      %v971 = vpop.permute.xlu0 %970
      %972 = vrot.lane.b32.xlu0 %v869, 12
      %v973 = vpop.permute.xlu0 %972
      %990 = vrot.lane.b32.xlu0 %v870, 18
      %v991 = vpop.permute.xlu0 %990
      %992 = vrot.lane.b32.xlu0 %v871, 18
      %v993 = vpop.permute.xlu0 %992
      %994 = vrot.lane.b32.xlu0 %v872, 18
      %v995 = vpop.permute.xlu0 %994
      %996 = vrot.lane.b32.xlu0 %v873, 18
      %v997 = vpop.permute.xlu0 %996
      %998 = vrot.lane.b32.xlu0 %v874, 18
      %v999 = vpop.permute.xlu0 %998
      %1000 = vrot.lane.b32.xlu0 %v875, 18
      %v1001 = vpop.permute.xlu0 %1000
      %1002 = vrot.lane.b32.xlu0 %v876, 18
      %v1003 = vpop.permute.xlu0 %1002
      %1004 = vrot.lane.b32.xlu0 %v877, 18
      %v1005 = vpop.permute.xlu0 %1004
      %1022 = vrot.lane.b32.xlu0 %v878, 24
      %v1023 = vpop.permute.xlu0 %1022
      %1024 = vrot.lane.b32.xlu0 %v879, 24
      %v1025 = vpop.permute.xlu0 %1024
      %1026 = vrot.lane.b32.xlu0 %v880, 24
      %v1027 = vpop.permute.xlu0 %1026
      %1028 = vrot.lane.b32.xlu0 %v881, 24
      %v1029 = vpop.permute.xlu0 %1028
      %1030 = vrot.lane.b32.xlu0 %v882, 24
      %v1031 = vpop.permute.xlu0 %1030
      %1032 = vrot.lane.b32.xlu0 %v883, 24
      %v1033 = vpop.permute.xlu0 %1032
      %1034 = vrot.lane.b32.xlu0 %v884, 24
      %v1035 = vpop.permute.xlu0 %1034
      %1036 = vrot.lane.b32.xlu0 %v885, 24
      %v1037 = vpop.permute.xlu0 %1036
      %1054 = vrot.lane.b32.xlu0 %v886, 30
      %v1055 = vpop.permute.xlu0 %1054
      %1056 = vrot.lane.b32.xlu0 %v887, 30
      %v1057 = vpop.permute.xlu0 %1056
      %1058 = vrot.lane.b32.xlu0 %v888, 30
      %v1059 = vpop.permute.xlu0 %1058
      %1060 = vrot.lane.b32.xlu0 %v889, 30
      %v1061 = vpop.permute.xlu0 %1060
      %1062 = vrot.lane.b32.xlu0 %v890, 30
      %v1063 = vpop.permute.xlu0 %1062
      %1064 = vrot.lane.b32.xlu0 %v891, 30
      %v1065 = vpop.permute.xlu0 %1064
      %1066 = vrot.lane.b32.xlu0 %v892, 30
      %v1067 = vpop.permute.xlu0 %1066
      %1068 = vrot.lane.b32.xlu0 %v893, 30
      %v1069 = vpop.permute.xlu0 %1068
      %1086 = vrot.lane.b32.xlu0 %v894, 36
      %v1087 = vpop.permute.xlu0 %1086
      %1088 = vrot.lane.b32.xlu0 %v895, 36
      %v1089 = vpop.permute.xlu0 %1088
      %1090 = vrot.lane.b32.xlu0 %v896, 36
      %v1091 = vpop.permute.xlu0 %1090
      %1092 = vrot.lane.b32.xlu0 %v897, 36
      %v1093 = vpop.permute.xlu0 %1092
      %1094 = vrot.lane.b32.xlu0 %v898, 36
      %v1095 = vpop.permute.xlu0 %1094
      %1096 = vrot.lane.b32.xlu0 %v899, 36
      %v1097 = vpop.permute.xlu0 %1096
      %1098 = vrot.lane.b32.xlu0 %v900, 36
      %v1099 = vpop.permute.xlu0 %1098
      %1100 = vrot.lane.b32.xlu0 %v901, 36
      %v1101 = vpop.permute.xlu0 %1100
      %1118 = vrot.lane.b32.xlu0 %v902, 42
      %v1119 = vpop.permute.xlu0 %1118
      %1120 = vrot.lane.b32.xlu0 %v903, 42
      %v1121 = vpop.permute.xlu0 %1120
      %1122 = vrot.lane.b32.xlu0 %v904, 42
      %v1123 = vpop.permute.xlu0 %1122
      %1124 = vrot.lane.b32.xlu0 %v905, 42
      %v1125 = vpop.permute.xlu0 %1124
      %1126 = vrot.lane.b32.xlu0 %v906, 42
      %v1127 = vpop.permute.xlu0 %1126
      %1128 = vrot.lane.b32.xlu0 %v907, 42
      %v1129 = vpop.permute.xlu0 %1128
      %1130 = vrot.lane.b32.xlu0 %v908, 42
      %v1131 = vpop.permute.xlu0 %1130
      %1132 = vrot.lane.b32.xlu0 %v909, 42
      %v1133 = vpop.permute.xlu0 %1132
      %1150 = vrot.lane.b32.xlu0 %v910, 48
      %v1151 = vpop.permute.xlu0 %1150
      %1152 = vrot.lane.b32.xlu0 %v911, 48
      %v1153 = vpop.permute.xlu0 %1152
      %1154 = vrot.lane.b32.xlu0 %v912, 48
      %v1155 = vpop.permute.xlu0 %1154
      %1156 = vrot.lane.b32.xlu0 %v913, 48
      %v1157 = vpop.permute.xlu0 %1156
      %1158 = vrot.lane.b32.xlu0 %v914, 48
      %v1159 = vpop.permute.xlu0 %1158
      %1160 = vrot.lane.b32.xlu0 %v915, 48
      %v1161 = vpop.permute.xlu0 %1160
      %1162 = vrot.lane.b32.xlu0 %v916, 48
      %v1163 = vpop.permute.xlu0 %1162
      %1164 = vrot.lane.b32.xlu0 %v917, 48
      %v1165 = vpop.permute.xlu0 %1164
      %v1174 = vsel %vm300, %v845, %v927
      %v1175 = vsel %vm300, %v846, %v929
      %v1176 = vsel %vm300, %v847, %v931
      %v1177 = vsel %vm300, %v848, %v933
      %v1178 = vsel %vm300, %v849, %v935
      %v1179 = vsel %vm300, %v850, %v937
      %v1180 = vsel %vm300, %v851, %v939
      %v1181 = vsel %vm300, %v852, %v941
      %vm1182 = vcmask 97280
      %v1183 = vsel %vm1182, %v1174, %v959
      %v1184 = vsel %vm1182, %v1175, %v961
      %v1185 = vsel %vm1182, %v1176, %v963
      %v1186 = vsel %vm1182, %v1177, %v965
      %v1187 = vsel %vm1182, %v1178, %v967
      %v1188 = vsel %vm1182, %v1179, %v969
      %v1189 = vsel %vm1182, %v1180, %v971
      %v1190 = vsel %vm1182, %v1181, %v973
      %vm1191 = vcmask 146432
      %v1192 = vsel %vm1191, %v1183, %v991
      %v1193 = vsel %vm1191, %v1184, %v993
      %v1194 = vsel %vm1191, %v1185, %v995
      %v1195 = vsel %vm1191, %v1186, %v997
      %v1196 = vsel %vm1191, %v1187, %v999
      %v1197 = vsel %vm1191, %v1188, %v1001
      %v1198 = vsel %vm1191, %v1189, %v1003
      %v1199 = vsel %vm1191, %v1190, %v1005
      %vm1200 = vcmask 195584
      %v1201 = vsel %vm1200, %v1192, %v1023
      %v1202 = vsel %vm1200, %v1193, %v1025
      %v1203 = vsel %vm1200, %v1194, %v1027
      %v1204 = vsel %vm1200, %v1195, %v1029
      %v1205 = vsel %vm1200, %v1196, %v1031
      %v1206 = vsel %vm1200, %v1197, %v1033
      %v1207 = vsel %vm1200, %v1198, %v1035
      %v1208 = vsel %vm1200, %v1199, %v1037
      %vm1209 = vcmask 244736
      %v1210 = vsel %vm1209, %v1201, %v1055
      %v1211 = vsel %vm1209, %v1202, %v1057
      %v1212 = vsel %vm1209, %v1203, %v1059
      %v1213 = vsel %vm1209, %v1204, %v1061
      %v1214 = vsel %vm1209, %v1205, %v1063
      %v1215 = vsel %vm1209, %v1206, %v1065
      %v1216 = vsel %vm1209, %v1207, %v1067
      %v1217 = vsel %vm1209, %v1208, %v1069
      %vm1218 = vcmask 293888
      %v1219 = vsel %vm1218, %v1210, %v1087
      %v1220 = vsel %vm1218, %v1211, %v1089
      %v1221 = vsel %vm1218, %v1212, %v1091
      %v1222 = vsel %vm1218, %v1213, %v1093
      %v1223 = vsel %vm1218, %v1214, %v1095
      %v1224 = vsel %vm1218, %v1215, %v1097
      %v1225 = vsel %vm1218, %v1216, %v1099
      %v1226 = vsel %vm1218, %v1217, %v1101
      %vm1227 = vcmask 343040
      %v1228 = vsel %vm1227, %v1219, %v1119
      %v1229 = vsel %vm1227, %v1220, %v1121
      %v1230 = vsel %vm1227, %v1221, %v1123
      %v1231 = vsel %vm1227, %v1222, %v1125
      %v1232 = vsel %vm1227, %v1223, %v1127
      %v1233 = vsel %vm1227, %v1224, %v1129
      %v1234 = vsel %vm1227, %v1225, %v1131
      %v1235 = vsel %vm1227, %v1226, %v1133
      %vm1236 = vcmask 392192
      %v1237 = vsel %vm1236, %v1228, %v1151
      %v1238 = vsel %vm1236, %v1229, %v1153
      %v1239 = vsel %vm1236, %v1230, %v1155
      %v1240 = vsel %vm1236, %v1231, %v1157
      %v1241 = vsel %vm1236, %v1232, %v1159
      %v1242 = vsel %vm1236, %v1233, %v1161
      %v1243 = vsel %vm1236, %v1234, %v1163
      %v1244 = vsel %vm1236, %v1235, %v1165
      %v1245 = vpack.c.bf16 %v1237, %v1237
      %v1246 = vpack.c.bf16 %v1238, %v1238
      %v1247 = vpack.c.bf16 %v1239, %v1239
      %v1248 = vpack.c.bf16 %v1240, %v1240
      %v1249 = vpack.c.bf16 %v1241, %v1241
      %v1250 = vpack.c.bf16 %v1242, %v1242
      %v1251 = vpack.c.bf16 %v1243, %v1243
      %v1252 = vpack.c.bf16 %v1244, %v1244
      %v1253 = vld [vmem:[%s853 + $0x2] sm:$0xff]
      %v1254 = vld [vmem:[%s853 + $0x12] sm:$0xff]
      %v1255 = vld [vmem:[%s853 + $0x22] sm:$0xff]
      %v1256 = vld [vmem:[%s853 + $0x32] sm:$0xff]
      %v1257 = vld [vmem:[%s853 + $0x42] sm:$0xff]
      %v1258 = vld [vmem:[%s853 + $0x52] sm:$0xff]
      %v1259 = vld [vmem:[%s853 + $0x62] sm:$0xff]
      %v1260 = vld [vmem:[%s853 + $0x72] sm:$0xff]
      %v1261 = vld [vmem:[%s557 + $0x2] sm:$0xff]
      %v1262 = vld [vmem:[%s557 + $0x12] sm:$0xff]
      %v1263 = vld [vmem:[%s557 + $0x22] sm:$0xff]
      %v1264 = vld [vmem:[%s557 + $0x32] sm:$0xff]
      %v1265 = vld [vmem:[%s557 + $0x42] sm:$0xff]
      %v1266 = vld [vmem:[%s557 + $0x52] sm:$0xff]
      %v1267 = vld [vmem:[%s557 + $0x62] sm:$0xff]
      %v1268 = vld [vmem:[%s557 + $0x72] sm:$0xff]
      %v1269 = vld [vmem:[%s745 + $0x2] sm:$0xff]
      %v1270 = vld [vmem:[%s745 + $0x12] sm:$0xff]
      %v1271 = vld [vmem:[%s745 + $0x22] sm:$0xff]
      %v1272 = vld [vmem:[%s745 + $0x32] sm:$0xff]
      %v1273 = vld [vmem:[%s745 + $0x42] sm:$0xff]
      %v1274 = vld [vmem:[%s745 + $0x52] sm:$0xff]
      %v1275 = vld [vmem:[%s745 + $0x62] sm:$0xff]
      %v1276 = vld [vmem:[%s745 + $0x72] sm:$0xff]
      %1277 = vrot.lane.b32.xlu0 %v862, 6
      %v1278 = vpop.permute.xlu0 %1277
      %1279 = vrot.lane.b32.xlu0 %v863, 6
      %v1280 = vpop.permute.xlu0 %1279
      %1281 = vrot.lane.b32.xlu0 %v864, 6
      %v1282 = vpop.permute.xlu0 %1281
      %1283 = vrot.lane.b32.xlu0 %v865, 6
      %v1284 = vpop.permute.xlu0 %1283
      %1285 = vrot.lane.b32.xlu0 %v866, 6
      %v1286 = vpop.permute.xlu0 %1285
      %1287 = vrot.lane.b32.xlu0 %v867, 6
      %v1288 = vpop.permute.xlu0 %1287
      %1289 = vrot.lane.b32.xlu0 %v868, 6
      %v1290 = vpop.permute.xlu0 %1289
      %1291 = vrot.lane.b32.xlu0 %v869, 6
      %v1292 = vpop.permute.xlu0 %1291
      %1309 = vrot.lane.b32.xlu0 %v1253, 12
      %v1310 = vpop.permute.xlu0 %1309
      %1311 = vrot.lane.b32.xlu0 %v1254, 12
      %v1312 = vpop.permute.xlu0 %1311
      %1313 = vrot.lane.b32.xlu0 %v1255, 12
      %v1314 = vpop.permute.xlu0 %1313
      %1315 = vrot.lane.b32.xlu0 %v1256, 12
      %v1316 = vpop.permute.xlu0 %1315
      %1317 = vrot.lane.b32.xlu0 %v1257, 12
      %v1318 = vpop.permute.xlu0 %1317
      %1319 = vrot.lane.b32.xlu0 %v1258, 12
      %v1320 = vpop.permute.xlu0 %1319
      %1321 = vrot.lane.b32.xlu0 %v1259, 12
      %v1322 = vpop.permute.xlu0 %1321
      %1323 = vrot.lane.b32.xlu0 %v1260, 12
      %v1324 = vpop.permute.xlu0 %1323
      %1333 = vrot.lane.b32.xlu0 %v878, 18
      %v1334 = vpop.permute.xlu0 %1333
      %1335 = vrot.lane.b32.xlu0 %v879, 18
      %v1336 = vpop.permute.xlu0 %1335
      %1337 = vrot.lane.b32.xlu0 %v880, 18
      %v1338 = vpop.permute.xlu0 %1337
      %1339 = vrot.lane.b32.xlu0 %v881, 18
      %v1340 = vpop.permute.xlu0 %1339
      %1341 = vrot.lane.b32.xlu0 %v882, 18
      %v1342 = vpop.permute.xlu0 %1341
      %1343 = vrot.lane.b32.xlu0 %v883, 18
      %v1344 = vpop.permute.xlu0 %1343
      %1345 = vrot.lane.b32.xlu0 %v884, 18
      %v1346 = vpop.permute.xlu0 %1345
      %1347 = vrot.lane.b32.xlu0 %v885, 18
      %v1348 = vpop.permute.xlu0 %1347
      %1357 = vrot.lane.b32.xlu0 %v886, 24
      %v1358 = vpop.permute.xlu0 %1357
      %1359 = vrot.lane.b32.xlu0 %v887, 24
      %v1360 = vpop.permute.xlu0 %1359
      %1361 = vrot.lane.b32.xlu0 %v888, 24
      %v1362 = vpop.permute.xlu0 %1361
      %1363 = vrot.lane.b32.xlu0 %v889, 24
      %v1364 = vpop.permute.xlu0 %1363
      %1365 = vrot.lane.b32.xlu0 %v890, 24
      %v1366 = vpop.permute.xlu0 %1365
      %1367 = vrot.lane.b32.xlu0 %v891, 24
      %v1368 = vpop.permute.xlu0 %1367
      %1369 = vrot.lane.b32.xlu0 %v892, 24
      %v1370 = vpop.permute.xlu0 %1369
      %1371 = vrot.lane.b32.xlu0 %v893, 24
      %v1372 = vpop.permute.xlu0 %1371
      %1389 = vrot.lane.b32.xlu0 %v1261, 30
      %v1390 = vpop.permute.xlu0 %1389
      %1391 = vrot.lane.b32.xlu0 %v1262, 30
      %v1392 = vpop.permute.xlu0 %1391
      %1393 = vrot.lane.b32.xlu0 %v1263, 30
      %v1394 = vpop.permute.xlu0 %1393
      %1395 = vrot.lane.b32.xlu0 %v1264, 30
      %v1396 = vpop.permute.xlu0 %1395
      %1397 = vrot.lane.b32.xlu0 %v1265, 30
      %v1398 = vpop.permute.xlu0 %1397
      %1399 = vrot.lane.b32.xlu0 %v1266, 30
      %v1400 = vpop.permute.xlu0 %1399
      %1401 = vrot.lane.b32.xlu0 %v1267, 30
      %v1402 = vpop.permute.xlu0 %1401
      %1403 = vrot.lane.b32.xlu0 %v1268, 30
      %v1404 = vpop.permute.xlu0 %1403
      %1413 = vrot.lane.b32.xlu0 %v902, 36
      %v1414 = vpop.permute.xlu0 %1413
      %1415 = vrot.lane.b32.xlu0 %v903, 36
      %v1416 = vpop.permute.xlu0 %1415
      %1417 = vrot.lane.b32.xlu0 %v904, 36
      %v1418 = vpop.permute.xlu0 %1417
      %1419 = vrot.lane.b32.xlu0 %v905, 36
      %v1420 = vpop.permute.xlu0 %1419
      %1421 = vrot.lane.b32.xlu0 %v906, 36
      %v1422 = vpop.permute.xlu0 %1421
      %1423 = vrot.lane.b32.xlu0 %v907, 36
      %v1424 = vpop.permute.xlu0 %1423
      %1425 = vrot.lane.b32.xlu0 %v908, 36
      %v1426 = vpop.permute.xlu0 %1425
      %1427 = vrot.lane.b32.xlu0 %v909, 36
      %v1428 = vpop.permute.xlu0 %1427
      %1437 = vrot.lane.b32.xlu0 %v910, 42
      %v1438 = vpop.permute.xlu0 %1437
      %1439 = vrot.lane.b32.xlu0 %v911, 42
      %v1440 = vpop.permute.xlu0 %1439
      %1441 = vrot.lane.b32.xlu0 %v912, 42
      %v1442 = vpop.permute.xlu0 %1441
      %1443 = vrot.lane.b32.xlu0 %v913, 42
      %v1444 = vpop.permute.xlu0 %1443
      %1445 = vrot.lane.b32.xlu0 %v914, 42
      %v1446 = vpop.permute.xlu0 %1445
      %1447 = vrot.lane.b32.xlu0 %v915, 42
      %v1448 = vpop.permute.xlu0 %1447
      %1449 = vrot.lane.b32.xlu0 %v916, 42
      %v1450 = vpop.permute.xlu0 %1449
      %1451 = vrot.lane.b32.xlu0 %v917, 42
      %v1452 = vpop.permute.xlu0 %1451
      %1469 = vrot.lane.b32.xlu0 %v1269, 48
      %v1470 = vpop.permute.xlu0 %1469
      %1471 = vrot.lane.b32.xlu0 %v1270, 48
      %v1472 = vpop.permute.xlu0 %1471
      %1473 = vrot.lane.b32.xlu0 %v1271, 48
      %v1474 = vpop.permute.xlu0 %1473
      %1475 = vrot.lane.b32.xlu0 %v1272, 48
      %v1476 = vpop.permute.xlu0 %1475
      %1477 = vrot.lane.b32.xlu0 %v1273, 48
      %v1478 = vpop.permute.xlu0 %1477
      %1479 = vrot.lane.b32.xlu0 %v1274, 48
      %v1480 = vpop.permute.xlu0 %1479
      %1481 = vrot.lane.b32.xlu0 %v1275, 48
      %v1482 = vpop.permute.xlu0 %1481
      %1483 = vrot.lane.b32.xlu0 %v1276, 48
      %v1484 = vpop.permute.xlu0 %1483
      %v1493 = vsel %vm300, %v854, %v1278
      %v1494 = vsel %vm300, %v855, %v1280
      %v1495 = vsel %vm300, %v856, %v1282
      %v1496 = vsel %vm300, %v857, %v1284
      %v1497 = vsel %vm300, %v858, %v1286
      %v1498 = vsel %vm300, %v859, %v1288
      %v1499 = vsel %vm300, %v860, %v1290
      %v1500 = vsel %vm300, %v861, %v1292
      %v1501 = vsel %vm1182, %v1493, %v1310
      %v1502 = vsel %vm1182, %v1494, %v1312
      %v1503 = vsel %vm1182, %v1495, %v1314
      %v1504 = vsel %vm1182, %v1496, %v1316
      %v1505 = vsel %vm1182, %v1497, %v1318
      %v1506 = vsel %vm1182, %v1498, %v1320
      %v1507 = vsel %vm1182, %v1499, %v1322
      %v1508 = vsel %vm1182, %v1500, %v1324
      %v1509 = vsel %vm1191, %v1501, %v1334
      %v1510 = vsel %vm1191, %v1502, %v1336
      %v1511 = vsel %vm1191, %v1503, %v1338
      %v1512 = vsel %vm1191, %v1504, %v1340
      %v1513 = vsel %vm1191, %v1505, %v1342
      %v1514 = vsel %vm1191, %v1506, %v1344
      %v1515 = vsel %vm1191, %v1507, %v1346
      %v1516 = vsel %vm1191, %v1508, %v1348
      %v1517 = vsel %vm1200, %v1509, %v1358
      %v1518 = vsel %vm1200, %v1510, %v1360
      %v1519 = vsel %vm1200, %v1511, %v1362
      %v1520 = vsel %vm1200, %v1512, %v1364
      %v1521 = vsel %vm1200, %v1513, %v1366
      %v1522 = vsel %vm1200, %v1514, %v1368
      %v1523 = vsel %vm1200, %v1515, %v1370
      %v1524 = vsel %vm1200, %v1516, %v1372
      %v1525 = vsel %vm1209, %v1517, %v1390
      %v1526 = vsel %vm1209, %v1518, %v1392
      %v1527 = vsel %vm1209, %v1519, %v1394
      %v1528 = vsel %vm1209, %v1520, %v1396
      %v1529 = vsel %vm1209, %v1521, %v1398
      %v1530 = vsel %vm1209, %v1522, %v1400
      %v1531 = vsel %vm1209, %v1523, %v1402
      %v1532 = vsel %vm1209, %v1524, %v1404
      %v1533 = vsel %vm1218, %v1525, %v1414
      %v1534 = vsel %vm1218, %v1526, %v1416
      %v1535 = vsel %vm1218, %v1527, %v1418
      %v1536 = vsel %vm1218, %v1528, %v1420
      %v1537 = vsel %vm1218, %v1529, %v1422
      %v1538 = vsel %vm1218, %v1530, %v1424
      %v1539 = vsel %vm1218, %v1531, %v1426
      %v1540 = vsel %vm1218, %v1532, %v1428
      %v1541 = vsel %vm1227, %v1533, %v1438
      %v1542 = vsel %vm1227, %v1534, %v1440
      %v1543 = vsel %vm1227, %v1535, %v1442
      %v1544 = vsel %vm1227, %v1536, %v1444
      %v1545 = vsel %vm1227, %v1537, %v1446
      %v1546 = vsel %vm1227, %v1538, %v1448
      %v1547 = vsel %vm1227, %v1539, %v1450
      %v1548 = vsel %vm1227, %v1540, %v1452
      %v1549 = vsel %vm1236, %v1541, %v1470
      %v1550 = vsel %vm1236, %v1542, %v1472
      %v1551 = vsel %vm1236, %v1543, %v1474
      %v1552 = vsel %vm1236, %v1544, %v1476
      %v1553 = vsel %vm1236, %v1545, %v1478
      %v1554 = vsel %vm1236, %v1546, %v1480
      %v1555 = vsel %vm1236, %v1547, %v1482
      %v1556 = vsel %vm1236, %v1548, %v1484
      %v1557 = vpack.c.bf16 %v1549, %v1549
      %v1558 = vpack.c.bf16 %v1550, %v1550
      %v1559 = vpack.c.bf16 %v1551, %v1551
      %v1560 = vpack.c.bf16 %v1552, %v1552
      %v1561 = vpack.c.bf16 %v1553, %v1553
      %v1562 = vpack.c.bf16 %v1554, %v1554
      %v1563 = vpack.c.bf16 %v1555, %v1555
      %v1564 = vpack.c.bf16 %v1556, %v1556
      %s1565 = scalar_lea.vmem [#allocation2], 192
      %v1566 = vld [vmem:[%s1565] sm:$0xff]
      %v1567 = vld [vmem:[%s1565 + $0x10] sm:$0xff]
      %v1568 = vld [vmem:[%s1565 + $0x20] sm:$0xff]
      %v1569 = vld [vmem:[%s1565 + $0x30] sm:$0xff]
      %v1570 = vld [vmem:[%s1565 + $0x40] sm:$0xff]
      %v1571 = vld [vmem:[%s1565 + $0x50] sm:$0xff]
      %v1572 = vld [vmem:[%s1565 + $0x60] sm:$0xff]
      %v1573 = vld [vmem:[%s1565 + $0x70] sm:$0xff]
      %s1574 = scalar_lea.vmem [#allocation2], 32
      %v1575 = vld [vmem:[%s1574 + $0x1] sm:$0xff]
      %v1576 = vld [vmem:[%s1574 + $0x11] sm:$0xff]
      %v1577 = vld [vmem:[%s1574 + $0x21] sm:$0xff]
      %v1578 = vld [vmem:[%s1574 + $0x31] sm:$0xff]
      %v1579 = vld [vmem:[%s1574 + $0x41] sm:$0xff]
      %v1580 = vld [vmem:[%s1574 + $0x51] sm:$0xff]
      %v1581 = vld [vmem:[%s1574 + $0x61] sm:$0xff]
      %v1582 = vld [vmem:[%s1574 + $0x71] sm:$0xff]
      %v1583 = vld [vmem:[%s1565 + $0x1] sm:$0xff]
      %v1584 = vld [vmem:[%s1565 + $0x11] sm:$0xff]
      %v1585 = vld [vmem:[%s1565 + $0x21] sm:$0xff]
      %v1586 = vld [vmem:[%s1565 + $0x31] sm:$0xff]
      %v1587 = vld [vmem:[%s1565 + $0x41] sm:$0xff]
      %v1588 = vld [vmem:[%s1565 + $0x51] sm:$0xff]
      %v1589 = vld [vmem:[%s1565 + $0x61] sm:$0xff]
      %v1590 = vld [vmem:[%s1565 + $0x71] sm:$0xff]
      %1591 = vrot.lane.b32.xlu0 %v878, 6
      %v1592 = vpop.permute.xlu0 %1591
      %1593 = vrot.lane.b32.xlu0 %v879, 6
      %v1594 = vpop.permute.xlu0 %1593
      %1595 = vrot.lane.b32.xlu0 %v880, 6
      %v1596 = vpop.permute.xlu0 %1595
      %1597 = vrot.lane.b32.xlu0 %v881, 6
      %v1598 = vpop.permute.xlu0 %1597
      %1599 = vrot.lane.b32.xlu0 %v882, 6
      %v1600 = vpop.permute.xlu0 %1599
      %1601 = vrot.lane.b32.xlu0 %v883, 6
      %v1602 = vpop.permute.xlu0 %1601
      %1603 = vrot.lane.b32.xlu0 %v884, 6
      %v1604 = vpop.permute.xlu0 %1603
      %1605 = vrot.lane.b32.xlu0 %v885, 6
      %v1606 = vpop.permute.xlu0 %1605
      %1615 = vrot.lane.b32.xlu0 %v886, 12
      %v1616 = vpop.permute.xlu0 %1615
      %1617 = vrot.lane.b32.xlu0 %v887, 12
      %v1618 = vpop.permute.xlu0 %1617
      %1619 = vrot.lane.b32.xlu0 %v888, 12
      %v1620 = vpop.permute.xlu0 %1619
      %1621 = vrot.lane.b32.xlu0 %v889, 12
      %v1622 = vpop.permute.xlu0 %1621
      %1623 = vrot.lane.b32.xlu0 %v890, 12
      %v1624 = vpop.permute.xlu0 %1623
      %1625 = vrot.lane.b32.xlu0 %v891, 12
      %v1626 = vpop.permute.xlu0 %1625
      %1627 = vrot.lane.b32.xlu0 %v892, 12
      %v1628 = vpop.permute.xlu0 %1627
      %1629 = vrot.lane.b32.xlu0 %v893, 12
      %v1630 = vpop.permute.xlu0 %1629
      %1639 = vrot.lane.b32.xlu0 %v894, 18
      %v1640 = vpop.permute.xlu0 %1639
      %1641 = vrot.lane.b32.xlu0 %v895, 18
      %v1642 = vpop.permute.xlu0 %1641
      %1643 = vrot.lane.b32.xlu0 %v896, 18
      %v1644 = vpop.permute.xlu0 %1643
      %1645 = vrot.lane.b32.xlu0 %v897, 18
      %v1646 = vpop.permute.xlu0 %1645
      %1647 = vrot.lane.b32.xlu0 %v898, 18
      %v1648 = vpop.permute.xlu0 %1647
      %1649 = vrot.lane.b32.xlu0 %v899, 18
      %v1650 = vpop.permute.xlu0 %1649
      %1651 = vrot.lane.b32.xlu0 %v900, 18
      %v1652 = vpop.permute.xlu0 %1651
      %1653 = vrot.lane.b32.xlu0 %v901, 18
      %v1654 = vpop.permute.xlu0 %1653
      %1663 = vrot.lane.b32.xlu0 %v902, 24
      %v1664 = vpop.permute.xlu0 %1663
      %1665 = vrot.lane.b32.xlu0 %v903, 24
      %v1666 = vpop.permute.xlu0 %1665
      %1667 = vrot.lane.b32.xlu0 %v904, 24
      %v1668 = vpop.permute.xlu0 %1667
      %1669 = vrot.lane.b32.xlu0 %v905, 24
      %v1670 = vpop.permute.xlu0 %1669
      %1671 = vrot.lane.b32.xlu0 %v906, 24
      %v1672 = vpop.permute.xlu0 %1671
      %1673 = vrot.lane.b32.xlu0 %v907, 24
      %v1674 = vpop.permute.xlu0 %1673
      %1675 = vrot.lane.b32.xlu0 %v908, 24
      %v1676 = vpop.permute.xlu0 %1675
      %1677 = vrot.lane.b32.xlu0 %v909, 24
      %v1678 = vpop.permute.xlu0 %1677
      %1687 = vrot.lane.b32.xlu0 %v910, 30
      %v1688 = vpop.permute.xlu0 %1687
      %1689 = vrot.lane.b32.xlu0 %v911, 30
      %v1690 = vpop.permute.xlu0 %1689
      %1691 = vrot.lane.b32.xlu0 %v912, 30
      %v1692 = vpop.permute.xlu0 %1691
      %1693 = vrot.lane.b32.xlu0 %v913, 30
      %v1694 = vpop.permute.xlu0 %1693
      %1695 = vrot.lane.b32.xlu0 %v914, 30
      %v1696 = vpop.permute.xlu0 %1695
      %1697 = vrot.lane.b32.xlu0 %v915, 30
      %v1698 = vpop.permute.xlu0 %1697
      %1699 = vrot.lane.b32.xlu0 %v916, 30
      %v1700 = vpop.permute.xlu0 %1699
      %1701 = vrot.lane.b32.xlu0 %v917, 30
      %v1702 = vpop.permute.xlu0 %1701
      %1719 = vrot.lane.b32.xlu0 %v1566, 36
      %v1720 = vpop.permute.xlu0 %1719
      %1721 = vrot.lane.b32.xlu0 %v1567, 36
      %v1722 = vpop.permute.xlu0 %1721
      %1723 = vrot.lane.b32.xlu0 %v1568, 36
      %v1724 = vpop.permute.xlu0 %1723
      %1725 = vrot.lane.b32.xlu0 %v1569, 36
      %v1726 = vpop.permute.xlu0 %1725
      %1727 = vrot.lane.b32.xlu0 %v1570, 36
      %v1728 = vpop.permute.xlu0 %1727
      %1729 = vrot.lane.b32.xlu0 %v1571, 36
      %v1730 = vpop.permute.xlu0 %1729
      %1731 = vrot.lane.b32.xlu0 %v1572, 36
      %v1732 = vpop.permute.xlu0 %1731
      %1733 = vrot.lane.b32.xlu0 %v1573, 36
      %v1734 = vpop.permute.xlu0 %1733
      %1751 = vrot.lane.b32.xlu0 %v1575, 42
      %v1752 = vpop.permute.xlu0 %1751
      %1753 = vrot.lane.b32.xlu0 %v1576, 42
      %v1754 = vpop.permute.xlu0 %1753
      %1755 = vrot.lane.b32.xlu0 %v1577, 42
      %v1756 = vpop.permute.xlu0 %1755
      %1757 = vrot.lane.b32.xlu0 %v1578, 42
      %v1758 = vpop.permute.xlu0 %1757
      %1759 = vrot.lane.b32.xlu0 %v1579, 42
      %v1760 = vpop.permute.xlu0 %1759
      %1761 = vrot.lane.b32.xlu0 %v1580, 42
      %v1762 = vpop.permute.xlu0 %1761
      %1763 = vrot.lane.b32.xlu0 %v1581, 42
      %v1764 = vpop.permute.xlu0 %1763
      %1765 = vrot.lane.b32.xlu0 %v1582, 42
      %v1766 = vpop.permute.xlu0 %1765
      %1783 = vrot.lane.b32.xlu0 %v1583, 48
      %v1784 = vpop.permute.xlu0 %1783
      %1785 = vrot.lane.b32.xlu0 %v1584, 48
      %v1786 = vpop.permute.xlu0 %1785
      %1787 = vrot.lane.b32.xlu0 %v1585, 48
      %v1788 = vpop.permute.xlu0 %1787
      %1789 = vrot.lane.b32.xlu0 %v1586, 48
      %v1790 = vpop.permute.xlu0 %1789
      %1791 = vrot.lane.b32.xlu0 %v1587, 48
      %v1792 = vpop.permute.xlu0 %1791
      %1793 = vrot.lane.b32.xlu0 %v1588, 48
      %v1794 = vpop.permute.xlu0 %1793
      %1795 = vrot.lane.b32.xlu0 %v1589, 48
      %v1796 = vpop.permute.xlu0 %1795
      %1797 = vrot.lane.b32.xlu0 %v1590, 48
      %v1798 = vpop.permute.xlu0 %1797
      %v1807 = vsel %vm300, %v870, %v1592
      %v1808 = vsel %vm300, %v871, %v1594
      %v1809 = vsel %vm300, %v872, %v1596
      %v1810 = vsel %vm300, %v873, %v1598
      %v1811 = vsel %vm300, %v874, %v1600
      %v1812 = vsel %vm300, %v875, %v1602
      %v1813 = vsel %vm300, %v876, %v1604
      %v1814 = vsel %vm300, %v877, %v1606
      %v1815 = vsel %vm1182, %v1807, %v1616
      %v1816 = vsel %vm1182, %v1808, %v1618
      %v1817 = vsel %vm1182, %v1809, %v1620
      %v1818 = vsel %vm1182, %v1810, %v1622
      %v1819 = vsel %vm1182, %v1811, %v1624
      %v1820 = vsel %vm1182, %v1812, %v1626
      %v1821 = vsel %vm1182, %v1813, %v1628
      %v1822 = vsel %vm1182, %v1814, %v1630
      %v1823 = vsel %vm1191, %v1815, %v1640
      %v1824 = vsel %vm1191, %v1816, %v1642
      %v1825 = vsel %vm1191, %v1817, %v1644
      %v1826 = vsel %vm1191, %v1818, %v1646
      %v1827 = vsel %vm1191, %v1819, %v1648
      %v1828 = vsel %vm1191, %v1820, %v1650
      %v1829 = vsel %vm1191, %v1821, %v1652
      %v1830 = vsel %vm1191, %v1822, %v1654
      %v1831 = vsel %vm1200, %v1823, %v1664
      %v1832 = vsel %vm1200, %v1824, %v1666
      %v1833 = vsel %vm1200, %v1825, %v1668
      %v1834 = vsel %vm1200, %v1826, %v1670
      %v1835 = vsel %vm1200, %v1827, %v1672
      %v1836 = vsel %vm1200, %v1828, %v1674
      %v1837 = vsel %vm1200, %v1829, %v1676
      %v1838 = vsel %vm1200, %v1830, %v1678
      %v1839 = vsel %vm1209, %v1831, %v1688
      %v1840 = vsel %vm1209, %v1832, %v1690
      %v1841 = vsel %vm1209, %v1833, %v1692
      %v1842 = vsel %vm1209, %v1834, %v1694
      %v1843 = vsel %vm1209, %v1835, %v1696
      %v1844 = vsel %vm1209, %v1836, %v1698
      %v1845 = vsel %vm1209, %v1837, %v1700
      %v1846 = vsel %vm1209, %v1838, %v1702
      %v1847 = vsel %vm1218, %v1839, %v1720
      %v1848 = vsel %vm1218, %v1840, %v1722
      %v1849 = vsel %vm1218, %v1841, %v1724
      %v1850 = vsel %vm1218, %v1842, %v1726
      %v1851 = vsel %vm1218, %v1843, %v1728
      %v1852 = vsel %vm1218, %v1844, %v1730
      %v1853 = vsel %vm1218, %v1845, %v1732
      %v1854 = vsel %vm1218, %v1846, %v1734
      %v1855 = vsel %vm1227, %v1847, %v1752
      %v1856 = vsel %vm1227, %v1848, %v1754
      %v1857 = vsel %vm1227, %v1849, %v1756
      %v1858 = vsel %vm1227, %v1850, %v1758
      %v1859 = vsel %vm1227, %v1851, %v1760
      %v1860 = vsel %vm1227, %v1852, %v1762
      %v1861 = vsel %vm1227, %v1853, %v1764
      %v1862 = vsel %vm1227, %v1854, %v1766
      %v1863 = vsel %vm1236, %v1855, %v1784
      %v1864 = vsel %vm1236, %v1856, %v1786
      %v1865 = vsel %vm1236, %v1857, %v1788
      %v1866 = vsel %vm1236, %v1858, %v1790
      %v1867 = vsel %vm1236, %v1859, %v1792
      %v1868 = vsel %vm1236, %v1860, %v1794
      %v1869 = vsel %vm1236, %v1861, %v1796
      %v1870 = vsel %vm1236, %v1862, %v1798
      %v1871 = vpack.c.bf16 %v1863, %v1863
      %v1872 = vpack.c.bf16 %v1864, %v1864
      %v1873 = vpack.c.bf16 %v1865, %v1865
      %v1874 = vpack.c.bf16 %v1866, %v1866
      %v1875 = vpack.c.bf16 %v1867, %v1867
      %v1876 = vpack.c.bf16 %v1868, %v1868
      %v1877 = vpack.c.bf16 %v1869, %v1869
      %v1878 = vpack.c.bf16 %v1870, %v1870
      %v1879 = vld [vmem:[%s1574 + $0x2] sm:$0xff]
      %v1880 = vld [vmem:[%s1574 + $0x12] sm:$0xff]
      %v1881 = vld [vmem:[%s1574 + $0x22] sm:$0xff]
      %v1882 = vld [vmem:[%s1574 + $0x32] sm:$0xff]
      %v1883 = vld [vmem:[%s1574 + $0x42] sm:$0xff]
      %v1884 = vld [vmem:[%s1574 + $0x52] sm:$0xff]
      %v1885 = vld [vmem:[%s1574 + $0x62] sm:$0xff]
      %v1886 = vld [vmem:[%s1574 + $0x72] sm:$0xff]
      %1887 = vrot.lane.b32.xlu0 %v886, 6
      %v1888 = vpop.permute.xlu0 %1887
      %1889 = vrot.lane.b32.xlu0 %v887, 6
      %v1890 = vpop.permute.xlu0 %1889
      %1891 = vrot.lane.b32.xlu0 %v888, 6
      %v1892 = vpop.permute.xlu0 %1891
      %1893 = vrot.lane.b32.xlu0 %v889, 6
      %v1894 = vpop.permute.xlu0 %1893
      %1895 = vrot.lane.b32.xlu0 %v890, 6
      %v1896 = vpop.permute.xlu0 %1895
      %1897 = vrot.lane.b32.xlu0 %v891, 6
      %v1898 = vpop.permute.xlu0 %1897
      %1899 = vrot.lane.b32.xlu0 %v892, 6
      %v1900 = vpop.permute.xlu0 %1899
      %1901 = vrot.lane.b32.xlu0 %v893, 6
      %v1902 = vpop.permute.xlu0 %1901
      %1911 = vrot.lane.b32.xlu0 %v1261, 12
      %v1912 = vpop.permute.xlu0 %1911
      %1913 = vrot.lane.b32.xlu0 %v1262, 12
      %v1914 = vpop.permute.xlu0 %1913
      %1915 = vrot.lane.b32.xlu0 %v1263, 12
      %v1916 = vpop.permute.xlu0 %1915
      %1917 = vrot.lane.b32.xlu0 %v1264, 12
      %v1918 = vpop.permute.xlu0 %1917
      %1919 = vrot.lane.b32.xlu0 %v1265, 12
      %v1920 = vpop.permute.xlu0 %1919
      %1921 = vrot.lane.b32.xlu0 %v1266, 12
      %v1922 = vpop.permute.xlu0 %1921
      %1923 = vrot.lane.b32.xlu0 %v1267, 12
      %v1924 = vpop.permute.xlu0 %1923
      %1925 = vrot.lane.b32.xlu0 %v1268, 12
      %v1926 = vpop.permute.xlu0 %1925
      %1935 = vrot.lane.b32.xlu0 %v902, 18
      %v1936 = vpop.permute.xlu0 %1935
      %1937 = vrot.lane.b32.xlu0 %v903, 18
      %v1938 = vpop.permute.xlu0 %1937
      %1939 = vrot.lane.b32.xlu0 %v904, 18
      %v1940 = vpop.permute.xlu0 %1939
      %1941 = vrot.lane.b32.xlu0 %v905, 18
      %v1942 = vpop.permute.xlu0 %1941
      %1943 = vrot.lane.b32.xlu0 %v906, 18
      %v1944 = vpop.permute.xlu0 %1943
      %1945 = vrot.lane.b32.xlu0 %v907, 18
      %v1946 = vpop.permute.xlu0 %1945
      %1947 = vrot.lane.b32.xlu0 %v908, 18
      %v1948 = vpop.permute.xlu0 %1947
      %1949 = vrot.lane.b32.xlu0 %v909, 18
      %v1950 = vpop.permute.xlu0 %1949
      %1959 = vrot.lane.b32.xlu0 %v910, 24
      %v1960 = vpop.permute.xlu0 %1959
      %1961 = vrot.lane.b32.xlu0 %v911, 24
      %v1962 = vpop.permute.xlu0 %1961
      %1963 = vrot.lane.b32.xlu0 %v912, 24
      %v1964 = vpop.permute.xlu0 %1963
      %1965 = vrot.lane.b32.xlu0 %v913, 24
      %v1966 = vpop.permute.xlu0 %1965
      %1967 = vrot.lane.b32.xlu0 %v914, 24
      %v1968 = vpop.permute.xlu0 %1967
      %1969 = vrot.lane.b32.xlu0 %v915, 24
      %v1970 = vpop.permute.xlu0 %1969
      %1971 = vrot.lane.b32.xlu0 %v916, 24
      %v1972 = vpop.permute.xlu0 %1971
      %1973 = vrot.lane.b32.xlu0 %v917, 24
      %v1974 = vpop.permute.xlu0 %1973
      %1983 = vrot.lane.b32.xlu0 %v1269, 30
      %v1984 = vpop.permute.xlu0 %1983
      %1985 = vrot.lane.b32.xlu0 %v1270, 30
      %v1986 = vpop.permute.xlu0 %1985
      %1987 = vrot.lane.b32.xlu0 %v1271, 30
      %v1988 = vpop.permute.xlu0 %1987
      %1989 = vrot.lane.b32.xlu0 %v1272, 30
      %v1990 = vpop.permute.xlu0 %1989
      %1991 = vrot.lane.b32.xlu0 %v1273, 30
      %v1992 = vpop.permute.xlu0 %1991
      %1993 = vrot.lane.b32.xlu0 %v1274, 30
      %v1994 = vpop.permute.xlu0 %1993
      %1995 = vrot.lane.b32.xlu0 %v1275, 30
      %v1996 = vpop.permute.xlu0 %1995
      %1997 = vrot.lane.b32.xlu0 %v1276, 30
      %v1998 = vpop.permute.xlu0 %1997
      %2007 = vrot.lane.b32.xlu0 %v1575, 36
      %v2008 = vpop.permute.xlu0 %2007
      %2009 = vrot.lane.b32.xlu0 %v1576, 36
      %v2010 = vpop.permute.xlu0 %2009
      %2011 = vrot.lane.b32.xlu0 %v1577, 36
      %v2012 = vpop.permute.xlu0 %2011
      %2013 = vrot.lane.b32.xlu0 %v1578, 36
      %v2014 = vpop.permute.xlu0 %2013
      %2015 = vrot.lane.b32.xlu0 %v1579, 36
      %v2016 = vpop.permute.xlu0 %2015
      %2017 = vrot.lane.b32.xlu0 %v1580, 36
      %v2018 = vpop.permute.xlu0 %2017
      %2019 = vrot.lane.b32.xlu0 %v1581, 36
      %v2020 = vpop.permute.xlu0 %2019
      %2021 = vrot.lane.b32.xlu0 %v1582, 36
      %v2022 = vpop.permute.xlu0 %2021
      %2031 = vrot.lane.b32.xlu0 %v1583, 42
      %v2032 = vpop.permute.xlu0 %2031
      %2033 = vrot.lane.b32.xlu0 %v1584, 42
      %v2034 = vpop.permute.xlu0 %2033
      %2035 = vrot.lane.b32.xlu0 %v1585, 42
      %v2036 = vpop.permute.xlu0 %2035
      %2037 = vrot.lane.b32.xlu0 %v1586, 42
      %v2038 = vpop.permute.xlu0 %2037
      %2039 = vrot.lane.b32.xlu0 %v1587, 42
      %v2040 = vpop.permute.xlu0 %2039
      %2041 = vrot.lane.b32.xlu0 %v1588, 42
      %v2042 = vpop.permute.xlu0 %2041
      %2043 = vrot.lane.b32.xlu0 %v1589, 42
      %v2044 = vpop.permute.xlu0 %2043
      %2045 = vrot.lane.b32.xlu0 %v1590, 42
      %v2046 = vpop.permute.xlu0 %2045
      %2063 = vrot.lane.b32.xlu0 %v1879, 48
      %v2064 = vpop.permute.xlu0 %2063
      %2065 = vrot.lane.b32.xlu0 %v1880, 48
      %v2066 = vpop.permute.xlu0 %2065
      %2067 = vrot.lane.b32.xlu0 %v1881, 48
      %v2068 = vpop.permute.xlu0 %2067
      %2069 = vrot.lane.b32.xlu0 %v1882, 48
      %v2070 = vpop.permute.xlu0 %2069
      %2071 = vrot.lane.b32.xlu0 %v1883, 48
      %v2072 = vpop.permute.xlu0 %2071
      %2073 = vrot.lane.b32.xlu0 %v1884, 48
      %v2074 = vpop.permute.xlu0 %2073
      %2075 = vrot.lane.b32.xlu0 %v1885, 48
      %v2076 = vpop.permute.xlu0 %2075
      %2077 = vrot.lane.b32.xlu0 %v1886, 48
      %v2078 = vpop.permute.xlu0 %2077
      %v2087 = vsel %vm300, %v878, %v1888
      %v2088 = vsel %vm300, %v879, %v1890
      %v2089 = vsel %vm300, %v880, %v1892
      %v2090 = vsel %vm300, %v881, %v1894
      %v2091 = vsel %vm300, %v882, %v1896
      %v2092 = vsel %vm300, %v883, %v1898
      %v2093 = vsel %vm300, %v884, %v1900
      %v2094 = vsel %vm300, %v885, %v1902
      %v2095 = vsel %vm1182, %v2087, %v1912
      %v2096 = vsel %vm1182, %v2088, %v1914
      %v2097 = vsel %vm1182, %v2089, %v1916
      %v2098 = vsel %vm1182, %v2090, %v1918
      %v2099 = vsel %vm1182, %v2091, %v1920
      %v2100 = vsel %vm1182, %v2092, %v1922
      %v2101 = vsel %vm1182, %v2093, %v1924
      %v2102 = vsel %vm1182, %v2094, %v1926
      %v2103 = vsel %vm1191, %v2095, %v1936
      %v2104 = vsel %vm1191, %v2096, %v1938
      %v2105 = vsel %vm1191, %v2097, %v1940
      %v2106 = vsel %vm1191, %v2098, %v1942
      %v2107 = vsel %vm1191, %v2099, %v1944
      %v2108 = vsel %vm1191, %v2100, %v1946
      %v2109 = vsel %vm1191, %v2101, %v1948
      %v2110 = vsel %vm1191, %v2102, %v1950
      %v2111 = vsel %vm1200, %v2103, %v1960
      %v2112 = vsel %vm1200, %v2104, %v1962
      %v2113 = vsel %vm1200, %v2105, %v1964
      %v2114 = vsel %vm1200, %v2106, %v1966
      %v2115 = vsel %vm1200, %v2107, %v1968
      %v2116 = vsel %vm1200, %v2108, %v1970
      %v2117 = vsel %vm1200, %v2109, %v1972
      %v2118 = vsel %vm1200, %v2110, %v1974
      %v2119 = vsel %vm1209, %v2111, %v1984
      %v2120 = vsel %vm1209, %v2112, %v1986
      %v2121 = vsel %vm1209, %v2113, %v1988
      %v2122 = vsel %vm1209, %v2114, %v1990
      %v2123 = vsel %vm1209, %v2115, %v1992
      %v2124 = vsel %vm1209, %v2116, %v1994
      %v2125 = vsel %vm1209, %v2117, %v1996
      %v2126 = vsel %vm1209, %v2118, %v1998
      %v2127 = vsel %vm1218, %v2119, %v2008
      %v2128 = vsel %vm1218, %v2120, %v2010
      %v2129 = vsel %vm1218, %v2121, %v2012
      %v2130 = vsel %vm1218, %v2122, %v2014
      %v2131 = vsel %vm1218, %v2123, %v2016
      %v2132 = vsel %vm1218, %v2124, %v2018
      %v2133 = vsel %vm1218, %v2125, %v2020
      %v2134 = vsel %vm1218, %v2126, %v2022
      %v2135 = vsel %vm1227, %v2127, %v2032
      %v2136 = vsel %vm1227, %v2128, %v2034
      %v2137 = vsel %vm1227, %v2129, %v2036
      %v2138 = vsel %vm1227, %v2130, %v2038
      %v2139 = vsel %vm1227, %v2131, %v2040
      %v2140 = vsel %vm1227, %v2132, %v2042
      %v2141 = vsel %vm1227, %v2133, %v2044
      %v2142 = vsel %vm1227, %v2134, %v2046
      %v2143 = vsel %vm1236, %v2135, %v2064
      %v2144 = vsel %vm1236, %v2136, %v2066
      %v2145 = vsel %vm1236, %v2137, %v2068
      %v2146 = vsel %vm1236, %v2138, %v2070
      %v2147 = vsel %vm1236, %v2139, %v2072
      %v2148 = vsel %vm1236, %v2140, %v2074
      %v2149 = vsel %vm1236, %v2141, %v2076
      %v2150 = vsel %vm1236, %v2142, %v2078
      %v2151 = vpack.c.bf16 %v2143, %v2143
      %v2152 = vpack.c.bf16 %v2144, %v2144
      %v2153 = vpack.c.bf16 %v2145, %v2145
      %v2154 = vpack.c.bf16 %v2146, %v2146
      %v2155 = vpack.c.bf16 %v2147, %v2147
      %v2156 = vpack.c.bf16 %v2148, %v2148
      %v2157 = vpack.c.bf16 %v2149, %v2149
      %v2158 = vpack.c.bf16 %v2150, %v2150
      %v2167 = vunpack.c.l.b16 %v1245
      %v2168 = vunpack.c.l.b16 %v1246
      %v2169 = vunpack.c.l.b16 %v1247
      %v2170 = vunpack.c.l.b16 %v1248
      %v2171 = vunpack.c.l.b16 %v1249
      %v2172 = vunpack.c.l.b16 %v1250
      %v2173 = vunpack.c.l.b16 %v1251
      %v2174 = vunpack.c.l.b16 %v1252
      %v2175 = vpack.c.b16 %v2168, %v2167
      %v2176 = vpack.c.b16 %v2170, %v2169
      %v2177 = vpack.c.b16 %v2172, %v2171
      %v2178 = vpack.c.b16 %v2174, %v2173
      %v2187 = vunpack.c.l.b16 %v1557
      %v2188 = vunpack.c.l.b16 %v1558
      %v2189 = vunpack.c.l.b16 %v1559
      %v2190 = vunpack.c.l.b16 %v1560
      %v2191 = vunpack.c.l.b16 %v1561
      %v2192 = vunpack.c.l.b16 %v1562
      %v2193 = vunpack.c.l.b16 %v1563
      %v2194 = vunpack.c.l.b16 %v1564
      %v2195 = vpack.c.b16 %v2188, %v2187
      %v2196 = vpack.c.b16 %v2190, %v2189
      %v2197 = vpack.c.b16 %v2192, %v2191
      %v2198 = vpack.c.b16 %v2194, %v2193
      %v2207 = vunpack.c.l.b16 %v1871
      %v2208 = vunpack.c.l.b16 %v1872
      %v2209 = vunpack.c.l.b16 %v1873
      %v2210 = vunpack.c.l.b16 %v1874
      %v2211 = vunpack.c.l.b16 %v1875
      %v2212 = vunpack.c.l.b16 %v1876
      %v2213 = vunpack.c.l.b16 %v1877
      %v2214 = vunpack.c.l.b16 %v1878
      %v2215 = vpack.c.b16 %v2208, %v2207
      %v2216 = vpack.c.b16 %v2210, %v2209
      %v2217 = vpack.c.b16 %v2212, %v2211
      %v2218 = vpack.c.b16 %v2214, %v2213
      %v2227 = vunpack.c.l.b16 %v2151
      %v2228 = vunpack.c.l.b16 %v2152
      %v2229 = vunpack.c.l.b16 %v2153
      %v2230 = vunpack.c.l.b16 %v2154
      %v2231 = vunpack.c.l.b16 %v2155
      %v2232 = vunpack.c.l.b16 %v2156
      %v2233 = vunpack.c.l.b16 %v2157
      %v2234 = vunpack.c.l.b16 %v2158
      %v2235 = vpack.c.b16 %v2228, %v2227
      %v2236 = vpack.c.b16 %v2230, %v2229
      %v2237 = vpack.c.b16 %v2232, %v2231
      %v2238 = vpack.c.b16 %v2234, %v2233
      %v2239 = vld [vmem:[%s4] sm:$0xf]
      %v2240 = vld [vmem:[%s4 + $0x4] sm:$0xf]
      %v2241 = vld [vmem:[%s4 + $0x8] sm:$0xf]
      %v2242 = vld [vmem:[%s4 + $0xc] sm:$0xf]
      %v2243 = vld [vmem:[%s4 + $0x10] sm:$0xf]
      %v2244 = vld [vmem:[%s4 + $0x14] sm:$0xf]
      %v2245 = vld [vmem:[%s4 + $0x18] sm:$0x7]
      %v2253 = vunpack.c.l.b16 %v2239
      %v2254 = vunpack.c.l.b16 %v2240
      %v2255 = vunpack.c.l.b16 %v2241
      %v2256 = vunpack.c.l.b16 %v2242
      %v2257 = vunpack.c.l.b16 %v2243
      %v2258 = vunpack.c.l.b16 %v2244
      %v2259 = vunpack.c.l.b16 %v2245
      %v2260 = vpack.c.b16 %v2254, %v2253
      %v2261 = vpack.c.b16 %v2256, %v2255
      %v2262 = vpack.c.b16 %v2258, %v2257
      %v2263 = vpack.c.b16 %v2259, %v2259
      %vm2267 = vcmask 441344
      %v2269 = vsel %vm2267, %v2175, 0
      %v2272 = vsel %vm2267, %v2176, 0
      %v2275 = vsel %vm2267, %v2177, 0
      %v2278 = vsel %vm2267, %v2178, 0
      %v2281 = vsel %vm2267, %v2195, 0
      %v2284 = vsel %vm2267, %v2196, 0
      %v2287 = vsel %vm2267, %v2197, 0
      %v2290 = vsel %vm2267, %v2198, 0
      %v2293 = vsel %vm2267, %v2215, 0
      %v2296 = vsel %vm2267, %v2216, 0
      %v2299 = vsel %vm2267, %v2217, 0
      %v2302 = vsel %vm2267, %v2218, 0
      %v2305 = vsel %vm2267, %v2235, 0
      %v2308 = vsel %vm2267, %v2236, 0
      %v2311 = vsel %vm2267, %v2237, 0
      %v2314 = vsel %vm2267, %v2238, 0
      %vm2316 = vcmask 1042432
      %v2318 = vsel %vm2316, %v2263, 0
      %2320 = vmatprep.subr.bf16.mxu0 0
      %2321 = vmatpush1.bf16.msra.mxu0 %v2260
      %2322 = vmatprep.subr.bf16.mxu0 0
      %2323 = vmatpush1.bf16.msra.mxu0 %v2261
      %2324 = vmatprep.subr.bf16.mxu0 0
      %2325 = vmatpush1.bf16.msra.mxu0 %v2262
      %2326 = vmatprep.subr.bf16.mxu0 0
      %2327 = vmatpush1.bf16.msra.mxu0 %v2318
      %2328 = vmatprep.subr.bf16.mxu0 0
      %2329 = vmatpush1.bf16.msra.mxu0 0
      %2330 = vmatprep.subr.bf16.mxu0 0
      %2331 = vmatpush1.bf16.msra.mxu0 0
      %2332 = vmatprep.subr.bf16.mxu0 0
      %2333 = vmatpush1.bf16.msra.mxu0 0
      %2334 = vmatprep.subr.bf16.mxu0 0
      %2335 = vmatpush1.bf16.msra.mxu0 0
      %2336 = vmatprep.subr.bf16.mxu0 0
      %2337 = vmatpush1.bf16.msra.mxu0 0
      %2338 = vmatprep.subr.bf16.mxu0 0
      %2339 = vmatpush1.bf16.msra.mxu0 0
      %2340 = vmatprep.subr.bf16.mxu0 0
      %2341 = vmatpush1.bf16.msra.mxu0 0
      %2342 = vmatprep.subr.bf16.mxu0 0
      %2343 = vmatpush1.bf16.msra.mxu0 0
      %2344 = vmatprep.subr.bf16.mxu0 0
      %2345 = vmatpush1.bf16.msra.mxu0 0
      %2346 = vmatprep.subr.bf16.mxu0 0
      %2347 = vmatpush1.bf16.msra.mxu0 0
      %2348 = vmatprep.subr.bf16.mxu0 0
      %2349 = vmatpush1.bf16.msra.mxu0 0
      %2350 = vmatprep.subr.bf16.mxu0 0
      %2351 = vmatpush1.bf16.msra.mxu0 0
      %2352 = vmatprep.mubr.bf16.mxu0 0
      %2353 = vmatmul.mubr.bf16.gmra.mrb[0].mxu0 %v2269
      %v2354 = vpop.f32.mrb[0].mxu0
      %v2355 = vadd.f32 0.0, %v2354
      %v2356 = vpop.f32.mrb[0].mxu0
      %v2357 = vpop.f32.mrb[0].mxu0
      %v2358 = vadd.f32 0.0, %v2357
      %v2359 = vpop.f32.mrb[0].mxu0
      %2360 = vmatprep.mubr.bf16.mxu0 0
      %2361 = vmatmul.mubr.bf16.gmra.mrb[0].mxu0 %v2272
      %v2362 = vpop.f32.mrb[0].mxu0
      %v2363 = vadd.f32 0.0, %v2362
      %v2364 = vpop.f32.mrb[0].mxu0
      %v2365 = vpop.f32.mrb[0].mxu0
      %v2366 = vadd.f32 0.0, %v2365
      %v2367 = vpop.f32.mrb[0].mxu0
      %2368 = vmatprep.mubr.bf16.mxu0 0
      %2369 = vmatmul.mubr.bf16.gmra.mrb[0].mxu0 %v2275
      %v2370 = vpop.f32.mrb[0].mxu0
      %v2371 = vadd.f32 0.0, %v2370
      %v2372 = vpop.f32.mrb[0].mxu0
      %v2373 = vpop.f32.mrb[0].mxu0
      %v2374 = vadd.f32 0.0, %v2373
      %v2375 = vpop.f32.mrb[0].mxu0
      %2376 = vmatprep.mubr.bf16.mxu0 0
      %2377 = vmatmul.mubr.bf16.gmra.mrb[0].mxu0 %v2278
      %v2378 = vpop.f32.mrb[0].mxu0
      %v2379 = vadd.f32 0.0, %v2378
      %v2380 = vpop.f32.mrb[0].mxu0
      %v2381 = vpop.f32.mrb[0].mxu0
      %v2382 = vadd.f32 0.0, %v2381
      %v2383 = vpop.f32.mrb[0].mxu0
      %2384 = vmatprep.mubr.bf16.mxu0 0
      %2385 = vmatmul.mubr.bf16.gmra.mrb[0].mxu0 %v2281
      %v2386 = vpop.f32.mrb[0].mxu0
      %v2387 = vadd.f32 0.0, %v2386
      %v2388 = vpop.f32.mrb[0].mxu0
      %v2389 = vpop.f32.mrb[0].mxu0
      %v2390 = vadd.f32 0.0, %v2389
      %v2391 = vpop.f32.mrb[0].mxu0
      %2392 = vmatprep.mubr.bf16.mxu0 0
      %2393 = vmatmul.mubr.bf16.gmra.mrb[0].mxu0 %v2284
      %v2394 = vpop.f32.mrb[0].mxu0
      %v2395 = vadd.f32 0.0, %v2394
      %v2396 = vpop.f32.mrb[0].mxu0
      %v2397 = vpop.f32.mrb[0].mxu0
      %v2398 = vadd.f32 0.0, %v2397
      %v2399 = vpop.f32.mrb[0].mxu0
      %2400 = vmatprep.mubr.bf16.mxu0 0
      %2401 = vmatmul.mubr.bf16.gmra.mrb[0].mxu0 %v2287
      %v2402 = vpop.f32.mrb[0].mxu0
      %v2403 = vadd.f32 0.0, %v2402
      %v2404 = vpop.f32.mrb[0].mxu0
      %v2405 = vpop.f32.mrb[0].mxu0
      %v2406 = vadd.f32 0.0, %v2405
      %v2407 = vpop.f32.mrb[0].mxu0
      %2408 = vmatprep.mubr.bf16.mxu0 0
      %2409 = vmatmul.mubr.bf16.gmra.mrb[0].mxu0 %v2290
      %v2410 = vpop.f32.mrb[0].mxu0
      %v2411 = vadd.f32 0.0, %v2410
      %v2412 = vpop.f32.mrb[0].mxu0
      %v2413 = vpop.f32.mrb[0].mxu0
      %v2414 = vadd.f32 0.0, %v2413
      %v2415 = vpop.f32.mrb[0].mxu0
      %2416 = vmatprep.mubr.bf16.mxu0 0
      %2417 = vmatmul.mubr.bf16.gmra.mrb[0].mxu0 %v2293
      %v2418 = vpop.f32.mrb[0].mxu0
      %v2419 = vadd.f32 0.0, %v2418
      %v2420 = vpop.f32.mrb[0].mxu0
      %v2421 = vpop.f32.mrb[0].mxu0
      %v2422 = vadd.f32 0.0, %v2421
      %v2423 = vpop.f32.mrb[0].mxu0
      %2424 = vmatprep.mubr.bf16.mxu0 0
      %2425 = vmatmul.mubr.bf16.gmra.mrb[0].mxu0 %v2296
      %v2426 = vpop.f32.mrb[0].mxu0
      %v2427 = vadd.f32 0.0, %v2426
      %v2428 = vpop.f32.mrb[0].mxu0
      %v2429 = vpop.f32.mrb[0].mxu0
      %v2430 = vadd.f32 0.0, %v2429
      %v2431 = vpop.f32.mrb[0].mxu0
      %2432 = vmatprep.mubr.bf16.mxu0 0
      %2433 = vmatmul.mubr.bf16.gmra.mrb[0].mxu0 %v2299
      %v2434 = vpop.f32.mrb[0].mxu0
      %v2435 = vadd.f32 0.0, %v2434
      %v2436 = vpop.f32.mrb[0].mxu0
      %v2437 = vpop.f32.mrb[0].mxu0
      %v2438 = vadd.f32 0.0, %v2437
      %v2439 = vpop.f32.mrb[0].mxu0
      %2440 = vmatprep.mubr.bf16.mxu0 0
      %2441 = vmatmul.mubr.bf16.gmra.mrb[0].mxu0 %v2302
      %v2442 = vpop.f32.mrb[0].mxu0
      %v2443 = vadd.f32 0.0, %v2442
      %v2444 = vpop.f32.mrb[0].mxu0
      %v2445 = vpop.f32.mrb[0].mxu0
      %v2446 = vadd.f32 0.0, %v2445
      %v2447 = vpop.f32.mrb[0].mxu0
      %2448 = vmatprep.mubr.bf16.mxu0 0
      %2449 = vmatmul.mubr.bf16.gmra.mrb[0].mxu0 %v2305
      %v2450 = vpop.f32.mrb[0].mxu0
      %v2451 = vadd.f32 0.0, %v2450
      %v2452 = vpop.f32.mrb[0].mxu0
      %v2453 = vpop.f32.mrb[0].mxu0
      %v2454 = vadd.f32 0.0, %v2453
      %v2455 = vpop.f32.mrb[0].mxu0
      %2456 = vmatprep.mubr.bf16.mxu0 0
      %2457 = vmatmul.mubr.bf16.gmra.mrb[0].mxu0 %v2308
      %v2458 = vpop.f32.mrb[0].mxu0
      %v2459 = vadd.f32 0.0, %v2458
      %v2460 = vpop.f32.mrb[0].mxu0
      %v2461 = vpop.f32.mrb[0].mxu0
      %v2462 = vadd.f32 0.0, %v2461
      %v2463 = vpop.f32.mrb[0].mxu0
      %2464 = vmatprep.mubr.bf16.mxu0 0
      %2465 = vmatmul.mubr.bf16.gmra.mrb[0].mxu0 %v2311
      %v2466 = vpop.f32.mrb[0].mxu0
      %v2467 = vadd.f32 0.0, %v2466
      %v2468 = vpop.f32.mrb[0].mxu0
      %v2469 = vpop.f32.mrb[0].mxu0
      %v2470 = vadd.f32 0.0, %v2469
      %v2471 = vpop.f32.mrb[0].mxu0
      %2472 = vmatprep.mubr.bf16.mxu0 0
      %2473 = vmatmul.mubr.bf16.gmra.mrb[0].mxu0 %v2314
      %v2474 = vpop.f32.mrb[0].mxu0
      %v2475 = vadd.f32 0.0, %v2474
      %v2476 = vpop.f32.mrb[0].mxu0
      %v2477 = vpop.f32.mrb[0].mxu0
      %v2478 = vadd.f32 0.0, %v2477
      %v2479 = vpop.f32.mrb[0].mxu0
      %2480 = vdwg.mxu0
      %v2481 = vld [vmem:[%s5] sm:$0x1]
      %v2483 = vlaneseq
      %v2484 = vshrl.u32 %v2483, 7
      %v2485 = vsub.s32 0, %v2484
      %v2486 = vrot.slane %v2481, %v2485
      %v2488 = vmul.f32 %v2355, %v2486
      %v2489 = vmul.f32 %v2358, %v2486
      %v2490 = vmul.f32 %v2363, %v2486
      %v2491 = vmul.f32 %v2366, %v2486
      %v2492 = vmul.f32 %v2371, %v2486
      %v2493 = vmul.f32 %v2374, %v2486
      %v2494 = vmul.f32 %v2379, %v2486
      %v2495 = vmul.f32 %v2382, %v2486
      %v2496 = vmul.f32 %v2387, %v2486
      %v2497 = vmul.f32 %v2390, %v2486
      %v2498 = vmul.f32 %v2395, %v2486
      %v2499 = vmul.f32 %v2398, %v2486
      %v2500 = vmul.f32 %v2403, %v2486
      %v2501 = vmul.f32 %v2406, %v2486
      %v2502 = vmul.f32 %v2411, %v2486
      %v2503 = vmul.f32 %v2414, %v2486
      %v2504 = vmul.f32 %v2419, %v2486
      %v2505 = vmul.f32 %v2422, %v2486
      %v2506 = vmul.f32 %v2427, %v2486
      %v2507 = vmul.f32 %v2430, %v2486
      %v2508 = vmul.f32 %v2435, %v2486
      %v2509 = vmul.f32 %v2438, %v2486
      %v2510 = vmul.f32 %v2443, %v2486
      %v2511 = vmul.f32 %v2446, %v2486
      %v2512 = vmul.f32 %v2451, %v2486
      %v2513 = vmul.f32 %v2454, %v2486
      %v2514 = vmul.f32 %v2459, %v2486
      %v2515 = vmul.f32 %v2462, %v2486
      %v2516 = vmul.f32 %v2467, %v2486
      %v2517 = vmul.f32 %v2470, %v2486
      %v2518 = vmul.f32 %v2475, %v2486
      %v2519 = vmul.f32 %v2478, %v2486
      %v2520 = vld [vmem:[%s6] sm:$0x1]
      %v2522 = vlaneseq
      %v2523 = vshrl.u32 %v2522, 7
      %v2524 = vsub.s32 0, %v2523
      %v2525 = vrot.slane %v2520, %v2524
      %v2527 = vadd.f32 %v2488, %v2525
      %v2528 = vadd.f32 %v2489, %v2525
      %v2529 = vadd.f32 %v2490, %v2525
      %v2530 = vadd.f32 %v2491, %v2525
      %v2531 = vadd.f32 %v2492, %v2525
      %v2532 = vadd.f32 %v2493, %v2525
      %v2533 = vadd.f32 %v2494, %v2525
      %v2534 = vadd.f32 %v2495, %v2525
      %v2535 = vadd.f32 %v2496, %v2525
      %v2536 = vadd.f32 %v2497, %v2525
      %v2537 = vadd.f32 %v2498, %v2525
      %v2538 = vadd.f32 %v2499, %v2525
      %v2539 = vadd.f32 %v2500, %v2525
      %v2540 = vadd.f32 %v2501, %v2525
      %v2541 = vadd.f32 %v2502, %v2525
      %v2542 = vadd.f32 %v2503, %v2525
      %v2543 = vadd.f32 %v2504, %v2525
      %v2544 = vadd.f32 %v2505, %v2525
      %v2545 = vadd.f32 %v2506, %v2525
      %v2546 = vadd.f32 %v2507, %v2525
      %v2547 = vadd.f32 %v2508, %v2525
      %v2548 = vadd.f32 %v2509, %v2525
      %v2549 = vadd.f32 %v2510, %v2525
      %v2550 = vadd.f32 %v2511, %v2525
      %v2551 = vadd.f32 %v2512, %v2525
      %v2552 = vadd.f32 %v2513, %v2525
      %v2553 = vadd.f32 %v2514, %v2525
      %v2554 = vadd.f32 %v2515, %v2525
      %v2555 = vadd.f32 %v2516, %v2525
      %v2556 = vadd.f32 %v2517, %v2525
      %v2557 = vadd.f32 %v2518, %v2525
      %v2558 = vadd.f32 %v2519, %v2525
      %v2559 = vmax.f32 %v2527, 0.0
      %v2560 = vmax.f32 %v2528, 0.0
      %v2561 = vmax.f32 %v2529, 0.0
      %v2562 = vmax.f32 %v2530, 0.0
      %v2563 = vmax.f32 %v2531, 0.0
      %v2564 = vmax.f32 %v2532, 0.0
      %v2565 = vmax.f32 %v2533, 0.0
      %v2566 = vmax.f32 %v2534, 0.0
      %v2567 = vmax.f32 %v2535, 0.0
      %v2568 = vmax.f32 %v2536, 0.0
      %v2569 = vmax.f32 %v2537, 0.0
      %v2570 = vmax.f32 %v2538, 0.0
      %v2571 = vmax.f32 %v2539, 0.0
      %v2572 = vmax.f32 %v2540, 0.0
      %v2573 = vmax.f32 %v2541, 0.0
      %v2574 = vmax.f32 %v2542, 0.0
      %v2575 = vmax.f32 %v2543, 0.0
      %v2576 = vmax.f32 %v2544, 0.0
      %v2577 = vmax.f32 %v2545, 0.0
      %v2578 = vmax.f32 %v2546, 0.0
      %v2579 = vmax.f32 %v2547, 0.0
      %v2580 = vmax.f32 %v2548, 0.0
      %v2581 = vmax.f32 %v2549, 0.0
      %v2582 = vmax.f32 %v2550, 0.0
      %v2583 = vmax.f32 %v2551, 0.0
      %v2584 = vmax.f32 %v2552, 0.0
      %v2585 = vmax.f32 %v2553, 0.0
      %v2586 = vmax.f32 %v2554, 0.0
      %v2587 = vmax.f32 %v2555, 0.0
      %v2588 = vmax.f32 %v2556, 0.0
      %v2589 = vmax.f32 %v2557, 0.0
      %v2590 = vmax.f32 %v2558, 0.0
      %2591 = vst.msk [vmem:[%s298] sm:$0xff] %vm418, %v2559
      %2592 = vst.msk [vmem:[%s298 + $0x8] sm:$0xff] %vm418, %v2560
      %2593 = vst.msk [vmem:[%s298 + $0x10] sm:$0xff] %vm418, %v2561
      %2594 = vst.msk [vmem:[%s298 + $0x18] sm:$0xff] %vm418, %v2562
      %2595 = vst.msk [vmem:[%s298 + $0x20] sm:$0xff] %vm418, %v2563
      %2596 = vst.msk [vmem:[%s298 + $0x28] sm:$0xff] %vm418, %v2564
      %2597 = vst.msk [vmem:[%s298 + $0x30] sm:$0xff] %vm418, %v2565
      %2598 = vst.msk [vmem:[%s298 + $0x38] sm:$0xff] %vm418, %v2566
      %2599 = vst.msk [vmem:[%s298 + $0x40] sm:$0xff] %vm418, %v2567
      %2600 = vst.msk [vmem:[%s298 + $0x48] sm:$0xff] %vm418, %v2568
      %2601 = vst.msk [vmem:[%s298 + $0x50] sm:$0xff] %vm418, %v2569
      %2602 = vst.msk [vmem:[%s298 + $0x58] sm:$0xff] %vm418, %v2570
      %2603 = vst.msk [vmem:[%s298 + $0x60] sm:$0xff] %vm418, %v2571
      %2604 = vst.msk [vmem:[%s298 + $0x68] sm:$0xff] %vm418, %v2572
      %2605 = vst.msk [vmem:[%s298 + $0x70] sm:$0xff] %vm418, %v2573
      %2606 = vst.msk [vmem:[%s298 + $0x78] sm:$0xff] %vm418, %v2574
      %2607 = vst.msk [vmem:[%s298 + $0x80] sm:$0xff] %vm418, %v2575
      %2608 = vst.msk [vmem:[%s298 + $0x88] sm:$0xff] %vm418, %v2576
      %2609 = vst.msk [vmem:[%s298 + $0x90] sm:$0xff] %vm418, %v2577
      %2610 = vst.msk [vmem:[%s298 + $0x98] sm:$0xff] %vm418, %v2578
      %2611 = vst.msk [vmem:[%s298 + $0xa0] sm:$0xff] %vm418, %v2579
      %2612 = vst.msk [vmem:[%s298 + $0xa8] sm:$0xff] %vm418, %v2580
      %2613 = vst.msk [vmem:[%s298 + $0xb0] sm:$0xff] %vm418, %v2581
      %2614 = vst.msk [vmem:[%s298 + $0xb8] sm:$0xff] %vm418, %v2582
      %2615 = vst.msk [vmem:[%s298 + $0xc0] sm:$0xff] %vm418, %v2583
      %2616 = vst.msk [vmem:[%s298 + $0xc8] sm:$0xff] %vm418, %v2584
      %2617 = vst.msk [vmem:[%s298 + $0xd0] sm:$0xff] %vm418, %v2585
      %2618 = vst.msk [vmem:[%s298 + $0xd8] sm:$0xff] %vm418, %v2586
      %2619 = vst.msk [vmem:[%s298 + $0xe0] sm:$0xff] %vm418, %v2587
      %2620 = vst.msk [vmem:[%s298 + $0xe8] sm:$0xff] %vm418, %v2588
      %2621 = vst.msk [vmem:[%s298 + $0xf0] sm:$0xff] %vm418, %v2589
      %2622 = vst.msk [vmem:[%s298 + $0xf8] sm:$0xff] %vm418, %v2590
      %p2623 = scmp.lt.s32.totalorder %s18, 1
      %s2624 = scalar_select %p2623, %s18, 1
      %s2625 = smul.addr %s2624, 32
      %s2626 = smul.addr %s2625, 8
      %s2627 = scalar_lea.vmem %s7, %s2626
      // Predicated region
      $region49: #{decoder_block_forward.1} parent=47 // pred_check
        %p2628 = pneg %p193
      $region50: #{decoder_block_forward.1} parent=47 // pred_check_branch
        %2630 = sbr.rel (%p2628) target = $region52
      $region51: #{decoder_block_forward.1} parent=47 // pred_region
        _
      $region52: #{decoder_block_forward.1} parent=47 // pred_fallthru
        _
    $region48: #{decoder_block_forward.1} parent=5 // pred_fallthru
      _
    %p2631 = scmp.le.s32.totalorder 2, %s13
    // Predicated region
    $region53: #{decoder_block_forward.1} parent=5 // pred_check
      %p2632 = pneg %p2631
    $region54: #{decoder_block_forward.1} parent=5 // pred_check_branch
      %2634 = sbr.rel (%p2632) target = $region56
    $region55: #{decoder_block_forward.1} parent=5 // pred_region
      %s2635 = ssub.s32 %s13, 2
      // Predicated region
      $region57: #{decoder_block_forward.1} parent=55 // pred_check
        %p2636 = pneg %p199
      $region58: #{decoder_block_forward.1} parent=55 // pred_check_branch
        %2638 = sbr.rel (%p2636) target = $region60
      $region59: #{decoder_block_forward.1} parent=55 // pred_region
        %p2639 = scmp.lt.s32.totalorder %s19, 1
        %s2640 = scalar_select %p2639, %s19, 1
        %s2641 = smul.addr %s2640, 32
        %s2642 = smul.addr %s2641, 8
        %s2643 = scalar_lea.vmem %s7, %s2642
      $region60: #{decoder_block_forward.1} parent=55 // pred_fallthru
        _
    $region56: #{decoder_block_forward.1} parent=5 // pred_fallthru
      _
  $region6: #{decoder_block_forward.1} parent=0 // loop_footer
    %s17 = sadd.s32 1, %s13
  $region7: #{decoder_block_forward.1} parent=0 // loop_footer_branch
    %12 = sbr.rel target = $region3
  $region8: #{decoder_block_forward.1} parent=0 // loop_exit
    _

</llo_original>
